<compile_context>
chip_gen: v7x
topology: tpu7x:2x2x1
jax: 0.10.0
libtpu: 0.0.40
codegen_flags: <defaults>
</compile_context>

<pallas_src>
import functools

import numpy as np
import jax
import jax.numpy as jnp
from jax.experimental import pallas as pl
from jax.experimental.pallas import tpu as pltpu

# ----------------------------------------------------------------------------
# Fixed module geometry (from the PyTorch spec + MADDPG test shapes).
# ----------------------------------------------------------------------------
C_IN, D_IN, H_IN, W_IN = 3, 2, 32, 32
C1, K1, S1 = 16, (2, 3, 3), 4                 # conv1: Conv3d(3, 16, (2,3,3), stride=4)
C2, K2, S2 = 32, (1, 3, 3), 2                 # conv2: Conv3d(16, 32, (1,3,3), stride=2)
H1 = (H_IN - K1[1]) // S1 + 1                 # 8
W1 = (W_IN - K1[2]) // S1 + 1                 # 8
H2 = (H1 - K2[1]) // S2 + 1                   # 3
W2 = (W1 - K2[2]) // S2 + 1                   # 3
P2 = H2 * W2                                  # 9   conv2 output positions
J2 = K2[1] * K2[2]                            # 9   conv2 kernel offsets
KDIM1 = C_IN * K1[0] * K1[1] * K1[2]          # 54  conv1 patch length
FLAT = C2 * P2                                # 288 flattened conv features
ACT_DIM = 2
FC1_IN, FC1_OUT, FC2_OUT = FLAT + ACT_DIM, 256, 2


# ----------------------------------------------------------------------------
# Host-side im2col: static strided slices only (no gather HLO).
# ----------------------------------------------------------------------------
def _im2col_conv2_grouped(state_f32, batch, gp):
    """(J2*GP, 54) bf16 conv1 im2col, rows ordered (j, p, b).

    Group j = (dy2, dx2) holds, for every conv2 output position p = (oh2, ow2)
    and batch b, the conv1 patch at conv1-output position
    (oh2*S2 + dy2, ow2*S2 + dx2); patch elements follow the PyTorch Conv3d
    weight flatten order (cin, dz, dy1, dx1).  Each group is zero-padded to GP
    rows so every in-kernel slice start is sublane-tile aligned.
    """
    cols = []
    for dz in range(K1[0]):
        for dy in range(K1[1]):
            for dx in range(K1[2]):
                cols.append(state_f32[:, :, dz,
                                      dy:dy + (H1 - 1) * S1 + 1:S1,
                                      dx:dx + (W1 - 1) * S1 + 1:S1])       # (B, 3, 8, 8)
    patches = jnp.stack(cols, axis=2)                                       # (B, 3, 18, 8, 8)
    patches = patches.transpose(0, 3, 4, 1, 2).reshape(batch, H1, W1, KDIM1)
    patches = patches.astype(jnp.bfloat16)                                  # k = (cin, dz, dy1, dx1)

    groups = []
    for dy2 in range(K2[1]):
        for dx2 in range(K2[2]):
            g = patches[:, dy2:dy2 + (H2 - 1) * S2 + 1:S2,
                        dx2:dx2 + (W2 - 1) * S2 + 1:S2, :]                  # (B, 3, 3, 54)
            g = g.transpose(1, 2, 0, 3).reshape(P2 * batch, KDIM1)          # rows (p, b)
            if gp > P2 * batch:
                g = jnp.pad(g, ((0, gp - P2 * batch), (0, 0)))
            groups.append(g)
    return jnp.concatenate(groups, axis=0)                                  # (J2*GP, 54)


# ----------------------------------------------------------------------------
# The fused Pallas kernel: conv1 -> conv2 -> flatten -> fc1 -> fc2.
# Everything lives in VMEM / vregs; only the (B, 2) result is stored to HBM.
# ----------------------------------------------------------------------------
def _fused_forward_kernel(x1_ref, act_ref, w1_ref, b1_ref, w2_ref, b2_ref,
                          fc1wc_ref, fc1wa_ref, fc1b_ref, fc2w_ref, fc2b_ref,
                          out_ref, flat_ref, *, batch, gp):
    # conv1 + ReLU: one MXU matmul over all (j, p, b) patch rows.
    h1 = jnp.dot(x1_ref[...], w1_ref[...], preferred_element_type=jnp.float32)
    h1 = jnp.maximum(h1 + b1_ref[...], 0.0).astype(jnp.bfloat16)            # (J2*GP, 16)

    # conv2 + ReLU: 9 offset matmuls over contiguous, tile-aligned GP-row blocks.
    acc = jnp.dot(h1[0:gp, :], w2_ref[0], preferred_element_type=jnp.float32)
    for j in range(1, J2):
        acc = acc + jnp.dot(h1[j * gp:(j + 1) * gp, :], w2_ref[j],
                            preferred_element_type=jnp.float32)
    h2 = jnp.maximum(acc + b2_ref[...], 0.0).astype(jnp.bfloat16)           # (GP, 32), rows (p, b)

    # Flatten (p, b, c) -> (b, p*32 + c): 9 lane-slab stores to a VMEM scratch.
    for p in range(P2):
        flat_ref[:, p * C2:(p + 1) * C2] = h2[p * batch:(p + 1) * batch, :]

    # fc1 + ReLU: one K=288 matmul + tiny K=2 action matmul, f32 epilogue.
    y = jnp.dot(flat_ref[...], fc1wc_ref[...], preferred_element_type=jnp.float32)
    y = y + jnp.dot(act_ref[...], fc1wa_ref[...], preferred_element_type=jnp.float32)
    y = jnp.maximum(y + fc1b_ref[...], 0.0).astype(jnp.bfloat16)            # (B, 256)

    # fc2 -- the only HBM store of the whole forward.
    out_ref[...] = (jnp.dot(y, fc2w_ref[...], preferred_element_type=jnp.float32)
                    + fc2b_ref[...])


# ----------------------------------------------------------------------------
# Parameters: PyTorch layout at init, converted ONCE to matmul-ready layout.
# ----------------------------------------------------------------------------
def init_params(key):
    """Deterministic params in PyTorch layout (Conv3d/Linear style uniform init)."""
    def uniform(k, shape, fan_in):
        bound = 1.0 / np.sqrt(fan_in)
        return jax.random.uniform(k, shape, jnp.float32, -bound, bound)

    ks = jax.random.split(key, 8)
    return {
        "conv1_w": uniform(ks[0], (C1, C_IN) + K1, KDIM1),
        "conv1_b": uniform(ks[1], (C1,), KDIM1),
        "conv2_w": uniform(ks[2], (C2, C1) + K2, C1 * K2[1] * K2[2]),
        "conv2_b": uniform(ks[3], (C2,), C1 * K2[1] * K2[2]),
        "fc1_w": uniform(ks[4], (FC1_OUT, FC1_IN), FC1_IN),
        "fc1_b": uniform(ks[5], (FC1_OUT,), FC1_IN),
        "fc2_w": uniform(ks[6], (FC2_OUT, FC1_OUT), FC1_OUT),
        "fc2_b": uniform(ks[7], (FC2_OUT,), FC1_OUT),
    }


def prepare_params(torch_params):
    """One-time conversion to kernel layout: bf16 MXU weights, f32 biases.

    fc1's conv-feature rows are permuted so PyTorch's NCDHW flatten order
    (c*9 + p) is absorbed into the weight; the kernel's flat activation uses
    (p*32 + c) order, avoiding any per-call activation transpose.
    """
    p = torch_params
    w1 = p["conv1_w"].reshape(C1, KDIM1).T.astype(jnp.bfloat16)             # (54, 16)
    w2 = jnp.transpose(p["conv2_w"].reshape(C2, C1, J2),
                       (2, 1, 0)).astype(jnp.bfloat16)                      # (9, 16, 32)
    w_eff = p["fc1_w"].T                                                    # (290, 256)
    perm = np.array([c * P2 + pp for pp in range(P2) for c in range(C2)],
                    dtype=np.int32)
    return {
        "w1": w1, "b1": p["conv1_b"].reshape(1, C1).astype(jnp.float32),
        "w2": w2, "b2": p["conv2_b"].reshape(1, C2).astype(jnp.float32),
        "fc1w_conv": w_eff[perm].astype(jnp.bfloat16),                      # (288, 256)
        "fc1w_act": w_eff[FLAT:].astype(jnp.bfloat16),                      # (2, 256)
        "fc1b": p["fc1_b"].reshape(1, FC1_OUT).astype(jnp.float32),
        "fc2w": p["fc2_w"].T.astype(jnp.bfloat16),                          # (256, 2)
        "fc2b": p["fc2_b"].reshape(1, FC2_OUT).astype(jnp.float32),
    }


# ----------------------------------------------------------------------------
# Forward pass (strided-slice im2col + one fused pallas_call, all under jit).
# ----------------------------------------------------------------------------
@jax.jit
def multi_agent_cnn_critic(kparams, state_ncdhw, action):
    B = state_ncdhw.shape[0]
    GP = ((P2 * B + 15) // 16) * 16            # per-j group rows, bf16-tile aligned
    x1 = _im2col_conv2_grouped(state_ncdhw.astype(jnp.float32), B, GP)

    kernel = functools.partial(_fused_forward_kernel, batch=B, gp=GP)
    vmem = pl.BlockSpec(memory_space=pltpu.MemorySpace.VMEM)
    return pl.pallas_call(
        kernel,
        out_shape=jax.ShapeDtypeStruct((B, FC2_OUT), jnp.float32),
        in_specs=[vmem] * 11,
        out_specs=vmem,
        scratch_shapes=[pltpu.VMEM((B, FLAT), jnp.bfloat16)],
    )(x1, action.astype(jnp.bfloat16),
      kparams["w1"], kparams["b1"], kparams["w2"], kparams["b2"],
      kparams["fc1w_conv"], kparams["fc1w_act"], kparams["fc1b"],
      kparams["fc2w"], kparams["fc2b"])


# ----------------------------------------------------------------------------
# Pure-JAX reference (mirrors the PyTorch forward exactly) for a sanity check.
# ----------------------------------------------------------------------------
def _reference_forward(tp, state, action):
    hi = jax.lax.Precision.HIGHEST
    x = jnp.transpose(state, (0, 2, 3, 4, 1)).astype(jnp.float32)           # NDHWC

    def conv3d_relu(x, w, b, stride):
        co = w.shape[0]
        kd, kh, kw = w.shape[2:]
        B, D, H, W, C = x.shape
        Do, Ho, Wo = (D - kd) // stride + 1, (H - kh) // stride + 1, (W - kw) // stride + 1
        cols = []
        for dz in range(kd):
            for dy in range(kh):
                for dx in range(kw):
                    cols.append(x[:, dz:dz + (Do - 1) * stride + 1:stride,
                                  dy:dy + (Ho - 1) * stride + 1:stride,
                                  dx:dx + (Wo - 1) * stride + 1:stride, :])
        patches = jnp.stack(cols, axis=-1).reshape(B, Do, Ho, Wo, C * kd * kh * kw)
        y = jnp.einsum("bdhwk,ok->bdhwo", patches, w.reshape(co, -1), precision=hi) + b
        return jnp.maximum(y, 0.0)

    x = conv3d_relu(x, tp["conv1_w"], tp["conv1_b"], S1)
    x = conv3d_relu(x, tp["conv2_w"], tp["conv2_b"], S2)
    B = x.shape[0]
    x = jnp.transpose(x, (0, 4, 1, 2, 3)).reshape(B, -1)                     # NCDHW flatten
    x = jnp.concatenate([x, action.astype(jnp.float32)], axis=1)
    x = jnp.maximum(jnp.dot(x, tp["fc1_w"].T, precision=hi) + tp["fc1_b"], 0.0)
    return jnp.dot(x, tp["fc2_w"].T, precision=hi) + tp["fc2_b"]


if __name__ == "__main__":
    key = jax.random.PRNGKey(0)
    kp, ks, ka = jax.random.split(key, 3)

    torch_params = init_params(kp)
    kernel_params = prepare_params(torch_params)

    # state: (batch=2, channels=3, depth=2, H=32, W=32); action: (2, 2)
    state = jax.random.normal(ks, (2, C_IN, D_IN, H_IN, W_IN), jnp.float32)
    action = jax.random.normal(ka, (2, ACT_DIM), jnp.float32)

    out = multi_agent_cnn_critic(kernel_params, state, action)
    out = jax.block_until_ready(out)
    assert out.shape == (2, FC2_OUT), out.shape

    ref = _reference_forward(torch_params, state, action)
    max_err = float(jnp.max(jnp.abs(out - ref)))
    # MXU operands are bf16 (f32 accumulate); reference is f32 HIGHEST.
    assert max_err < 2e-2, f"mismatch vs reference: {max_err}"
    print("KERNEL_OK")
</pallas_src>

<mosaic_0001>
module attributes {stable_mosaic.version = 11 : i64} {
  func.func @_fused_forward_kernel(%arg0: memref<288x54xbf16, #tpu.memory_space<vmem>>, %arg1: memref<2x2xbf16, #tpu.memory_space<vmem>>, %arg2: memref<54x16xbf16, #tpu.memory_space<vmem>>, %arg3: memref<1x16xf32, #tpu.memory_space<vmem>>, %arg4: memref<9x16x32xbf16, #tpu.memory_space<vmem>>, %arg5: memref<1x32xf32, #tpu.memory_space<vmem>>, %arg6: memref<288x256xbf16, #tpu.memory_space<vmem>>, %arg7: memref<2x256xbf16, #tpu.memory_space<vmem>>, %arg8: memref<1x256xf32, #tpu.memory_space<vmem>>, %arg9: memref<256x2xbf16, #tpu.memory_space<vmem>>, %arg10: memref<1x2xf32, #tpu.memory_space<vmem>>, %arg11: memref<2x2xf32, #tpu.memory_space<vmem>>, %arg12: memref<2x288xbf16, #tpu.memory_space<vmem>>) attributes {dimension_semantics = [], scalar_prefetch = 0 : i64, scratch_operands = 1 : i64, tpu.core_type = #tpu.core_type<tc>} {
    %c0 = arith.constant 0 : index
    %c0_0 = arith.constant 0 : index
    %0 = vector.load %arg0[%c0, %c0_0] : memref<288x54xbf16, #tpu.memory_space<vmem>>, vector<288x54xbf16>
    %c0_1 = arith.constant 0 : index
    %c0_2 = arith.constant 0 : index
    %1 = vector.load %arg2[%c0_1, %c0_2] : memref<54x16xbf16, #tpu.memory_space<vmem>>, vector<54x16xbf16>
    %cst = arith.constant dense<0.000000e+00> : vector<288x16xf32>
    %2 = tpu.matmul %0, %1, %cst {dimension_numbers = #tpu.dot_dimension_numbers<[1], [0], [0], [1], [0, 0, 1, 1], [], []>} : vector<288x54xbf16>, vector<54x16xbf16>, vector<288x16xf32> -> vector<288x16xf32>
    %c0_3 = arith.constant 0 : index
    %c0_4 = arith.constant 0 : index
    %3 = vector.load %arg3[%c0_3, %c0_4] : memref<1x16xf32, #tpu.memory_space<vmem>>, vector<1x16xf32>
    %4 = vector.broadcast %3 : vector<1x16xf32> to vector<288x16xf32>
    %5 = arith.addf %2, %4 : vector<288x16xf32>
    %cst_5 = arith.constant 0.000000e+00 : f32
    %6 = vector.broadcast %cst_5 : f32 to vector<288x16xf32>
    %7 = arith.maximumf %5, %6 : vector<288x16xf32>
    %8 = arith.truncf %7 : vector<288x16xf32> to vector<288x16xbf16>
    %9 = vector.extract_strided_slice %8 {offsets = [0, 0], sizes = [32, 16], strides = [1, 1]} : vector<288x16xbf16> to vector<32x16xbf16>
    %c0_6 = arith.constant 0 : index
    %c0_7 = arith.constant 0 : index
    %c0_8 = arith.constant 0 : index
    %10 = vector.load %arg4[%c0_6, %c0_7, %c0_8] : memref<9x16x32xbf16, #tpu.memory_space<vmem>>, vector<1x16x32xbf16>
    %11 = vector.shape_cast %10 : vector<1x16x32xbf16> to vector<16x32xbf16>
    %cst_9 = arith.constant dense<0.000000e+00> : vector<32x32xf32>
    %12 = tpu.matmul %9, %11, %cst_9 {dimension_numbers = #tpu.dot_dimension_numbers<[1], [0], [0], [1], [0, 0, 1, 1], [], []>} : vector<32x16xbf16>, vector<16x32xbf16>, vector<32x32xf32> -> vector<32x32xf32>
    %13 = vector.extract_strided_slice %8 {offsets = [32, 0], sizes = [32, 16], strides = [1, 1]} : vector<288x16xbf16> to vector<32x16xbf16>
    %c1 = arith.constant 1 : index
    %c0_10 = arith.constant 0 : index
    %c0_11 = arith.constant 0 : index
    %14 = vector.load %arg4[%c1, %c0_10, %c0_11] : memref<9x16x32xbf16, #tpu.memory_space<vmem>>, vector<1x16x32xbf16>
    %15 = vector.shape_cast %14 : vector<1x16x32xbf16> to vector<16x32xbf16>
    %cst_12 = arith.constant dense<0.000000e+00> : vector<32x32xf32>
    %16 = tpu.matmul %13, %15, %cst_12 {dimension_numbers = #tpu.dot_dimension_numbers<[1], [0], [0], [1], [0, 0, 1, 1], [], []>} : vector<32x16xbf16>, vector<16x32xbf16>, vector<32x32xf32> -> vector<32x32xf32>
    %17 = arith.addf %12, %16 : vector<32x32xf32>
    %18 = vector.extract_strided_slice %8 {offsets = [64, 0], sizes = [32, 16], strides = [1, 1]} : vector<288x16xbf16> to vector<32x16xbf16>
    %c2 = arith.constant 2 : index
    %c0_13 = arith.constant 0 : index
    %c0_14 = arith.constant 0 : index
    %19 = vector.load %arg4[%c2, %c0_13, %c0_14] : memref<9x16x32xbf16, #tpu.memory_space<vmem>>, vector<1x16x32xbf16>
    %20 = vector.shape_cast %19 : vector<1x16x32xbf16> to vector<16x32xbf16>
    %cst_15 = arith.constant dense<0.000000e+00> : vector<32x32xf32>
    %21 = tpu.matmul %18, %20, %cst_15 {dimension_numbers = #tpu.dot_dimension_numbers<[1], [0], [0], [1], [0, 0, 1, 1], [], []>} : vector<32x16xbf16>, vector<16x32xbf16>, vector<32x32xf32> -> vector<32x32xf32>
    %22 = arith.addf %17, %21 : vector<32x32xf32>
    %23 = vector.extract_strided_slice %8 {offsets = [96, 0], sizes = [32, 16], strides = [1, 1]} : vector<288x16xbf16> to vector<32x16xbf16>
    %c3 = arith.constant 3 : index
    %c0_16 = arith.constant 0 : index
    %c0_17 = arith.constant 0 : index
    %24 = vector.load %arg4[%c3, %c0_16, %c0_17] : memref<9x16x32xbf16, #tpu.memory_space<vmem>>, vector<1x16x32xbf16>
    %25 = vector.shape_cast %24 : vector<1x16x32xbf16> to vector<16x32xbf16>
    %cst_18 = arith.constant dense<0.000000e+00> : vector<32x32xf32>
    %26 = tpu.matmul %23, %25, %cst_18 {dimension_numbers = #tpu.dot_dimension_numbers<[1], [0], [0], [1], [0, 0, 1, 1], [], []>} : vector<32x16xbf16>, vector<16x32xbf16>, vector<32x32xf32> -> vector<32x32xf32>
    %27 = arith.addf %22, %26 : vector<32x32xf32>
    %28 = vector.extract_strided_slice %8 {offsets = [128, 0], sizes = [32, 16], strides = [1, 1]} : vector<288x16xbf16> to vector<32x16xbf16>
    %c4 = arith.constant 4 : index
    %c0_19 = arith.constant 0 : index
    %c0_20 = arith.constant 0 : index
    %29 = vector.load %arg4[%c4, %c0_19, %c0_20] : memref<9x16x32xbf16, #tpu.memory_space<vmem>>, vector<1x16x32xbf16>
    %30 = vector.shape_cast %29 : vector<1x16x32xbf16> to vector<16x32xbf16>
    %cst_21 = arith.constant dense<0.000000e+00> : vector<32x32xf32>
    %31 = tpu.matmul %28, %30, %cst_21 {dimension_numbers = #tpu.dot_dimension_numbers<[1], [0], [0], [1], [0, 0, 1, 1], [], []>} : vector<32x16xbf16>, vector<16x32xbf16>, vector<32x32xf32> -> vector<32x32xf32>
    %32 = arith.addf %27, %31 : vector<32x32xf32>
    %33 = vector.extract_strided_slice %8 {offsets = [160, 0], sizes = [32, 16], strides = [1, 1]} : vector<288x16xbf16> to vector<32x16xbf16>
    %c5 = arith.constant 5 : index
    %c0_22 = arith.constant 0 : index
    %c0_23 = arith.constant 0 : index
    %34 = vector.load %arg4[%c5, %c0_22, %c0_23] : memref<9x16x32xbf16, #tpu.memory_space<vmem>>, vector<1x16x32xbf16>
    %35 = vector.shape_cast %34 : vector<1x16x32xbf16> to vector<16x32xbf16>
    %cst_24 = arith.constant dense<0.000000e+00> : vector<32x32xf32>
    %36 = tpu.matmul %33, %35, %cst_24 {dimension_numbers = #tpu.dot_dimension_numbers<[1], [0], [0], [1], [0, 0, 1, 1], [], []>} : vector<32x16xbf16>, vector<16x32xbf16>, vector<32x32xf32> -> vector<32x32xf32>
    %37 = arith.addf %32, %36 : vector<32x32xf32>
    %38 = vector.extract_strided_slice %8 {offsets = [192, 0], sizes = [32, 16], strides = [1, 1]} : vector<288x16xbf16> to vector<32x16xbf16>
    %c6 = arith.constant 6 : index
    %c0_25 = arith.constant 0 : index
    %c0_26 = arith.constant 0 : index
    %39 = vector.load %arg4[%c6, %c0_25, %c0_26] : memref<9x16x32xbf16, #tpu.memory_space<vmem>>, vector<1x16x32xbf16>
    %40 = vector.shape_cast %39 : vector<1x16x32xbf16> to vector<16x32xbf16>
    %cst_27 = arith.constant dense<0.000000e+00> : vector<32x32xf32>
    %41 = tpu.matmul %38, %40, %cst_27 {dimension_numbers = #tpu.dot_dimension_numbers<[1], [0], [0], [1], [0, 0, 1, 1], [], []>} : vector<32x16xbf16>, vector<16x32xbf16>, vector<32x32xf32> -> vector<32x32xf32>
    %42 = arith.addf %37, %41 : vector<32x32xf32>
    %43 = vector.extract_strided_slice %8 {offsets = [224, 0], sizes = [32, 16], strides = [1, 1]} : vector<288x16xbf16> to vector<32x16xbf16>
    %c7 = arith.constant 7 : index
    %c0_28 = arith.constant 0 : index
    %c0_29 = arith.constant 0 : index
    %44 = vector.load %arg4[%c7, %c0_28, %c0_29] : memref<9x16x32xbf16, #tpu.memory_space<vmem>>, vector<1x16x32xbf16>
    %45 = vector.shape_cast %44 : vector<1x16x32xbf16> to vector<16x32xbf16>
    %cst_30 = arith.constant dense<0.000000e+00> : vector<32x32xf32>
    %46 = tpu.matmul %43, %45, %cst_30 {dimension_numbers = #tpu.dot_dimension_numbers<[1], [0], [0], [1], [0, 0, 1, 1], [], []>} : vector<32x16xbf16>, vector<16x32xbf16>, vector<32x32xf32> -> vector<32x32xf32>
    %47 = arith.addf %42, %46 : vector<32x32xf32>
    %48 = vector.extract_strided_slice %8 {offsets = [256, 0], sizes = [32, 16], strides = [1, 1]} : vector<288x16xbf16> to vector<32x16xbf16>
    %c8 = arith.constant 8 : index
    %c0_31 = arith.constant 0 : index
    %c0_32 = arith.constant 0 : index
    %49 = vector.load %arg4[%c8, %c0_31, %c0_32] : memref<9x16x32xbf16, #tpu.memory_space<vmem>>, vector<1x16x32xbf16>
    %50 = vector.shape_cast %49 : vector<1x16x32xbf16> to vector<16x32xbf16>
    %cst_33 = arith.constant dense<0.000000e+00> : vector<32x32xf32>
    %51 = tpu.matmul %48, %50, %cst_33 {dimension_numbers = #tpu.dot_dimension_numbers<[1], [0], [0], [1], [0, 0, 1, 1], [], []>} : vector<32x16xbf16>, vector<16x32xbf16>, vector<32x32xf32> -> vector<32x32xf32>
    %52 = arith.addf %47, %51 : vector<32x32xf32>
    %c0_34 = arith.constant 0 : index
    %c0_35 = arith.constant 0 : index
    %53 = vector.load %arg5[%c0_34, %c0_35] : memref<1x32xf32, #tpu.memory_space<vmem>>, vector<1x32xf32>
    %54 = vector.broadcast %53 : vector<1x32xf32> to vector<32x32xf32>
    %55 = arith.addf %52, %54 : vector<32x32xf32>
    %cst_36 = arith.constant 0.000000e+00 : f32
    %56 = vector.broadcast %cst_36 : f32 to vector<32x32xf32>
    %57 = arith.maximumf %55, %56 : vector<32x32xf32>
    %58 = arith.truncf %57 : vector<32x32xf32> to vector<32x32xbf16>
    %59 = vector.extract_strided_slice %58 {offsets = [0, 0], sizes = [2, 32], strides = [1, 1]} : vector<32x32xbf16> to vector<2x32xbf16>
    %c0_37 = arith.constant 0 : index
    %c0_38 = arith.constant 0 : index
    %60 = vector.load %arg12[%c0_37, %c0_38] : memref<2x288xbf16, #tpu.memory_space<vmem>>, vector<2x32xbf16>
    tpu.vector_store %arg12[%c0_37, %c0_38], %59 {strides = array<i32>} : memref<2x288xbf16, #tpu.memory_space<vmem>>, vector<2x32xbf16>,
    %61 = vector.extract_strided_slice %58 {offsets = [2, 0], sizes = [2, 32], strides = [1, 1]} : vector<32x32xbf16> to vector<2x32xbf16>
    %c0_39 = arith.constant 0 : index
    %c32 = arith.constant 32 : index
    %62 = vector.load %arg12[%c0_39, %c32] : memref<2x288xbf16, #tpu.memory_space<vmem>>, vector<2x32xbf16>
    tpu.vector_store %arg12[%c0_39, %c32], %61 {strides = array<i32>} : memref<2x288xbf16, #tpu.memory_space<vmem>>, vector<2x32xbf16>,
    %63 = vector.extract_strided_slice %58 {offsets = [4, 0], sizes = [2, 32], strides = [1, 1]} : vector<32x32xbf16> to vector<2x32xbf16>
    %c0_40 = arith.constant 0 : index
    %c64 = arith.constant 64 : index
    %64 = vector.load %arg12[%c0_40, %c64] : memref<2x288xbf16, #tpu.memory_space<vmem>>, vector<2x32xbf16>
    tpu.vector_store %arg12[%c0_40, %c64], %63 {strides = array<i32>} : memref<2x288xbf16, #tpu.memory_space<vmem>>, vector<2x32xbf16>,
    %65 = vector.extract_strided_slice %58 {offsets = [6, 0], sizes = [2, 32], strides = [1, 1]} : vector<32x32xbf16> to vector<2x32xbf16>
    %c0_41 = arith.constant 0 : index
    %c96 = arith.constant 96 : index
    %66 = vector.load %arg12[%c0_41, %c96] : memref<2x288xbf16, #tpu.memory_space<vmem>>, vector<2x32xbf16>
    tpu.vector_store %arg12[%c0_41, %c96], %65 {strides = array<i32>} : memref<2x288xbf16, #tpu.memory_space<vmem>>, vector<2x32xbf16>,
    %67 = vector.extract_strided_slice %58 {offsets = [8, 0], sizes = [2, 32], strides = [1, 1]} : vector<32x32xbf16> to vector<2x32xbf16>
    %c0_42 = arith.constant 0 : index
    %c128 = arith.constant 128 : index
    %68 = vector.load %arg12[%c0_42, %c128] : memref<2x288xbf16, #tpu.memory_space<vmem>>, vector<2x32xbf16>
    tpu.vector_store %arg12[%c0_42, %c128], %67 {strides = array<i32>} : memref<2x288xbf16, #tpu.memory_space<vmem>>, vector<2x32xbf16>,
    %69 = vector.extract_strided_slice %58 {offsets = [10, 0], sizes = [2, 32], strides = [1, 1]} : vector<32x32xbf16> to vector<2x32xbf16>
    %c0_43 = arith.constant 0 : index
    %c160 = arith.constant 160 : index
    %70 = vector.load %arg12[%c0_43, %c160] : memref<2x288xbf16, #tpu.memory_space<vmem>>, vector<2x32xbf16>
    tpu.vector_store %arg12[%c0_43, %c160], %69 {strides = array<i32>} : memref<2x288xbf16, #tpu.memory_space<vmem>>, vector<2x32xbf16>,
    %71 = vector.extract_strided_slice %58 {offsets = [12, 0], sizes = [2, 32], strides = [1, 1]} : vector<32x32xbf16> to vector<2x32xbf16>
    %c0_44 = arith.constant 0 : index
    %c192 = arith.constant 192 : index
    %72 = vector.load %arg12[%c0_44, %c192] : memref<2x288xbf16, #tpu.memory_space<vmem>>, vector<2x32xbf16>
    tpu.vector_store %arg12[%c0_44, %c192], %71 {strides = array<i32>} : memref<2x288xbf16, #tpu.memory_space<vmem>>, vector<2x32xbf16>,
    %73 = vector.extract_strided_slice %58 {offsets = [14, 0], sizes = [2, 32], strides = [1, 1]} : vector<32x32xbf16> to vector<2x32xbf16>
    %c0_45 = arith.constant 0 : index
    %c224 = arith.constant 224 : index
    %74 = vector.load %arg12[%c0_45, %c224] : memref<2x288xbf16, #tpu.memory_space<vmem>>, vector<2x32xbf16>
    tpu.vector_store %arg12[%c0_45, %c224], %73 {strides = array<i32>} : memref<2x288xbf16, #tpu.memory_space<vmem>>, vector<2x32xbf16>,
    %75 = vector.extract_strided_slice %58 {offsets = [16, 0], sizes = [2, 32], strides = [1, 1]} : vector<32x32xbf16> to vector<2x32xbf16>
    %c0_46 = arith.constant 0 : index
    %c256 = arith.constant 256 : index
    %76 = vector.load %arg12[%c0_46, %c256] : memref<2x288xbf16, #tpu.memory_space<vmem>>, vector<2x32xbf16>
    tpu.vector_store %arg12[%c0_46, %c256], %75 {strides = array<i32>} : memref<2x288xbf16, #tpu.memory_space<vmem>>, vector<2x32xbf16>,
    %c0_47 = arith.constant 0 : index
    %c0_48 = arith.constant 0 : index
    %77 = vector.load %arg12[%c0_47, %c0_48] : memref<2x288xbf16, #tpu.memory_space<vmem>>, vector<2x288xbf16>
    %c0_49 = arith.constant 0 : index
    %c0_50 = arith.constant 0 : index
    %78 = vector.load %arg6[%c0_49, %c0_50] : memref<288x256xbf16, #tpu.memory_space<vmem>>, vector<288x256xbf16>
    %cst_51 = arith.constant dense<0.000000e+00> : vector<2x256xf32>
    %79 = tpu.matmul %77, %78, %cst_51 {dimension_numbers = #tpu.dot_dimension_numbers<[1], [0], [0], [1], [0, 0, 1, 1], [], []>} : vector<2x288xbf16>, vector<288x256xbf16>, vector<2x256xf32> -> vector<2x256xf32>
    %c0_52 = arith.constant 0 : index
    %c0_53 = arith.constant 0 : index
    %80 = vector.load %arg1[%c0_52, %c0_53] : memref<2x2xbf16, #tpu.memory_space<vmem>>, vector<2x2xbf16>
    %c0_54 = arith.constant 0 : index
    %c0_55 = arith.constant 0 : index
    %81 = vector.load %arg7[%c0_54, %c0_55] : memref<2x256xbf16, #tpu.memory_space<vmem>>, vector<2x256xbf16>
    %cst_56 = arith.constant dense<0.000000e+00> : vector<2x256xf32>
    %82 = tpu.matmul %80, %81, %cst_56 {dimension_numbers = #tpu.dot_dimension_numbers<[1], [0], [0], [1], [0, 0, 1, 1], [], []>} : vector<2x2xbf16>, vector<2x256xbf16>, vector<2x256xf32> -> vector<2x256xf32>
    %83 = arith.addf %79, %82 : vector<2x256xf32>
    %c0_57 = arith.constant 0 : index
    %c0_58 = arith.constant 0 : index
    %84 = vector.load %arg8[%c0_57, %c0_58] : memref<1x256xf32, #tpu.memory_space<vmem>>, vector<1x256xf32>
    %85 = vector.broadcast %84 : vector<1x256xf32> to vector<2x256xf32>
    %86 = arith.addf %83, %85 : vector<2x256xf32>
    %cst_59 = arith.constant 0.000000e+00 : f32
    %87 = vector.broadcast %cst_59 : f32 to vector<2x256xf32>
    %88 = arith.maximumf %86, %87 : vector<2x256xf32>
    %89 = arith.truncf %88 : vector<2x256xf32> to vector<2x256xbf16>
    %c0_60 = arith.constant 0 : index
    %c0_61 = arith.constant 0 : index
    %90 = vector.load %arg9[%c0_60, %c0_61] : memref<256x2xbf16, #tpu.memory_space<vmem>>, vector<256x2xbf16>
    %cst_62 = arith.constant dense<0.000000e+00> : vector<2x2xf32>
    %91 = tpu.matmul %89, %90, %cst_62 {dimension_numbers = #tpu.dot_dimension_numbers<[1], [0], [0], [1], [0, 0, 1, 1], [], []>} : vector<2x256xbf16>, vector<256x2xbf16>, vector<2x2xf32> -> vector<2x2xf32>
    %c0_63 = arith.constant 0 : index
    %c0_64 = arith.constant 0 : index
    %92 = vector.load %arg10[%c0_63, %c0_64] : memref<1x2xf32, #tpu.memory_space<vmem>>, vector<1x2xf32>
    %93 = vector.broadcast %92 : vector<1x2xf32> to vector<2x2xf32>
    %94 = arith.addf %91, %93 : vector<2x2xf32>
    %c0_65 = arith.constant 0 : index
    %c0_66 = arith.constant 0 : index
    %95 = vector.load %arg11[%c0_65, %c0_66] : memref<2x2xf32, #tpu.memory_space<vmem>>, vector<2x2xf32>
    tpu.vector_store %arg11[%c0_65, %c0_66], %94 {strides = array<i32>} : memref<2x2xf32, #tpu.memory_space<vmem>>, vector<2x2xf32>,
    return
  }
}

</mosaic_0001>

<llo_original>
// kernel: multi_agent_cnn_critic.1
$region0: #{multi_agent_cnn_critic.1}
  #allocation0 [shape = 'u32[]', space=smem, size = 0x4, offset = 0x4, fixed_abs, tag = 'smem constant byte address 0x4 - core index']
  #allocation1 [shape = 'u32[144,128]{1,0:T(1,128)}', space=vmem, size = 0x12000, scoped, tag = 'internal scratch']
  #allocation2 [shape = 'bf16[2,288]{1,0:T(2,128)(2,1)}', space=vmem, size = 0x600, scoped, tag = 'scratch operand']
  %s0 = inlined_call_operand.vmem [shape: bf16[288,54], index: 0, kind: input, shape index: {}]
  %s1 = inlined_call_operand.vmem [shape: bf16[2,2], index: 1, kind: input, shape index: {}]
  %s2 = inlined_call_operand.vmem [shape: bf16[54,16], index: 2, kind: input, shape index: {}]
  %s3 = inlined_call_operand.vmem [shape: f32[1,16], index: 3, kind: input, shape index: {}]
  %s4 = inlined_call_operand.vmem [shape: bf16[9,16,32], index: 4, kind: input, shape index: {}]
  %s5 = inlined_call_operand.vmem [shape: f32[1,32], index: 5, kind: input, shape index: {}]
  %s6 = inlined_call_operand.vmem [shape: bf16[288,256], index: 6, kind: input, shape index: {}]
  %s7 = inlined_call_operand.vmem [shape: bf16[2,256], index: 7, kind: input, shape index: {}]
  %s8 = inlined_call_operand.vmem [shape: f32[1,256], index: 8, kind: input, shape index: {}]
  %s9 = inlined_call_operand.vmem [shape: bf16[256,2], index: 9, kind: input, shape index: {}]
  %s10 = inlined_call_operand.vmem [shape: f32[1,2], index: 10, kind: input, shape index: {}]
  %s11 = inlined_call_operand.hbm [shape: f32[2,2], index: 11, kind: output, shape index: {}]
  %s12 = sld [smem:[#allocation0]]
  $region54: #{multi_agent_cnn_critic.1} parent=0
    _
  %s14 = ssub.s32 1, %s12
  %s15 = scalar_select 0, %s14, %s12
  $region1: #{multi_agent_cnn_critic.1} parent=0
    #allocation3 [shape = 'u8[1024]{0}', space=vmem, size = 0x400, scoped, tag = 'output window, operand 0, single buffered']
    #allocation4 [shape = 's32[1]{0}', space=sflag, size = 0x4, scoped, tag = 'scoped memory for multi_agent_cnn_critic.1']
    %16 = vsyncpa [#allocation4], 0
    // Predicated region
    $region2: #{multi_agent_cnn_critic.1} parent=1 // pred_check
      _
    $region3: #{multi_agent_cnn_critic.1} parent=1 // pred_check_branch
      %18 = sbr.rel (0) target = $region5
    $region4: #{multi_agent_cnn_critic.1} parent=1 // pred_region
      _
    $region5: #{multi_agent_cnn_critic.1} parent=1 // pred_fallthru
      _
    // Predicated region
    $region6: #{multi_agent_cnn_critic.1} parent=1 // pred_check
      _
    $region7: #{multi_agent_cnn_critic.1} parent=1 // pred_check_branch
      %20 = sbr.rel (0) target = $region9
    $region8: #{multi_agent_cnn_critic.1} parent=1 // pred_region
      _
    $region9: #{multi_agent_cnn_critic.1} parent=1 // pred_fallthru
      _
    // Predicated region
    $region10: #{multi_agent_cnn_critic.1} parent=1 // pred_check
      _
    $region11: #{multi_agent_cnn_critic.1} parent=1 // pred_check_branch
      %22 = sbr.rel (0) target = $region13
    $region12: #{multi_agent_cnn_critic.1} parent=1 // pred_region
      _
    $region13: #{multi_agent_cnn_critic.1} parent=1 // pred_fallthru
      _
    // Predicated region
    $region14: #{multi_agent_cnn_critic.1} parent=1 // pred_check
      _
    $region15: #{multi_agent_cnn_critic.1} parent=1 // pred_check_branch
      %24 = sbr.rel (0) target = $region17
    $region16: #{multi_agent_cnn_critic.1} parent=1 // pred_region
      _
    $region17: #{multi_agent_cnn_critic.1} parent=1 // pred_fallthru
      _
    // Predicated region
    $region18: #{multi_agent_cnn_critic.1} parent=1 // pred_check
      _
    $region19: #{multi_agent_cnn_critic.1} parent=1 // pred_check_branch
      %26 = sbr.rel (0) target = $region21
    $region20: #{multi_agent_cnn_critic.1} parent=1 // pred_region
      _
    $region21: #{multi_agent_cnn_critic.1} parent=1 // pred_fallthru
      _
    // Predicated region
    $region22: #{multi_agent_cnn_critic.1} parent=1 // pred_check
      _
    $region23: #{multi_agent_cnn_critic.1} parent=1 // pred_check_branch
      %28 = sbr.rel (0) target = $region25
    $region24: #{multi_agent_cnn_critic.1} parent=1 // pred_region
      _
    $region25: #{multi_agent_cnn_critic.1} parent=1 // pred_fallthru
      _
    // Predicated region
    $region26: #{multi_agent_cnn_critic.1} parent=1 // pred_check
      _
    $region27: #{multi_agent_cnn_critic.1} parent=1 // pred_check_branch
      %30 = sbr.rel (0) target = $region29
    $region28: #{multi_agent_cnn_critic.1} parent=1 // pred_region
      _
    $region29: #{multi_agent_cnn_critic.1} parent=1 // pred_fallthru
      _
    // Predicated region
    $region30: #{multi_agent_cnn_critic.1} parent=1 // pred_check
      _
    $region31: #{multi_agent_cnn_critic.1} parent=1 // pred_check_branch
      %32 = sbr.rel (0) target = $region33
    $region32: #{multi_agent_cnn_critic.1} parent=1 // pred_region
      _
    $region33: #{multi_agent_cnn_critic.1} parent=1 // pred_fallthru
      _
    // Predicated region
    $region34: #{multi_agent_cnn_critic.1} parent=1 // pred_check
      _
    $region35: #{multi_agent_cnn_critic.1} parent=1 // pred_check_branch
      %34 = sbr.rel (0) target = $region37
    $region36: #{multi_agent_cnn_critic.1} parent=1 // pred_region
      _
    $region37: #{multi_agent_cnn_critic.1} parent=1 // pred_fallthru
      _
    // Predicated region
    $region38: #{multi_agent_cnn_critic.1} parent=1 // pred_check
      _
    $region39: #{multi_agent_cnn_critic.1} parent=1 // pred_check_branch
      %36 = sbr.rel (0) target = $region41
    $region40: #{multi_agent_cnn_critic.1} parent=1 // pred_region
      _
    $region41: #{multi_agent_cnn_critic.1} parent=1 // pred_fallthru
      _
    // Predicated region
    $region42: #{multi_agent_cnn_critic.1} parent=1 // pred_check
      _
    $region43: #{multi_agent_cnn_critic.1} parent=1 // pred_check_branch
      %38 = sbr.rel (0) target = $region45
    $region44: #{multi_agent_cnn_critic.1} parent=1 // pred_region
      _
    $region45: #{multi_agent_cnn_critic.1} parent=1 // pred_fallthru
      _
    %v40 = vld [vmem:[%s0] sm:$0xf]
    %v41 = vld [vmem:[%s0 + $0x4] sm:$0xf]
    %v42 = vld [vmem:[%s0 + $0x8] sm:$0xf]
    %v43 = vld [vmem:[%s0 + $0xc] sm:$0xf]
    %v44 = vld [vmem:[%s0 + $0x10] sm:$0xf]
    %v45 = vld [vmem:[%s0 + $0x14] sm:$0xf]
    %v46 = vld [vmem:[%s0 + $0x18] sm:$0xf]
    %v47 = vld [vmem:[%s0 + $0x1c] sm:$0xf]
    %v48 = vld [vmem:[%s0 + $0x20] sm:$0xf]
    %v49 = vld [vmem:[%s0 + $0x24] sm:$0xf]
    %v50 = vld [vmem:[%s0 + $0x28] sm:$0xf]
    %v51 = vld [vmem:[%s0 + $0x2c] sm:$0xf]
    %v52 = vld [vmem:[%s0 + $0x30] sm:$0xf]
    %v53 = vld [vmem:[%s0 + $0x34] sm:$0xf]
    %v54 = vld [vmem:[%s0 + $0x38] sm:$0xf]
    %v55 = vld [vmem:[%s0 + $0x3c] sm:$0xf]
    %v56 = vld [vmem:[%s0 + $0x40] sm:$0xf]
    %v57 = vld [vmem:[%s0 + $0x44] sm:$0xf]
    %v58 = vld [vmem:[%s0 + $0x48] sm:$0xf]
    %v59 = vld [vmem:[%s0 + $0x4c] sm:$0xf]
    %v60 = vld [vmem:[%s0 + $0x50] sm:$0xf]
    %v61 = vld [vmem:[%s0 + $0x54] sm:$0xf]
    %v62 = vld [vmem:[%s0 + $0x58] sm:$0xf]
    %v63 = vld [vmem:[%s0 + $0x5c] sm:$0xf]
    %v64 = vld [vmem:[%s0 + $0x60] sm:$0xf]
    %v65 = vld [vmem:[%s0 + $0x64] sm:$0xf]
    %v66 = vld [vmem:[%s0 + $0x68] sm:$0xf]
    %v67 = vld [vmem:[%s0 + $0x6c] sm:$0xf]
    %v68 = vld [vmem:[%s0 + $0x70] sm:$0xf]
    %v69 = vld [vmem:[%s0 + $0x74] sm:$0xf]
    %v70 = vld [vmem:[%s0 + $0x78] sm:$0xf]
    %v71 = vld [vmem:[%s0 + $0x7c] sm:$0xf]
    %v72 = vld [vmem:[%s0 + $0x80] sm:$0xf]
    %v73 = vld [vmem:[%s0 + $0x84] sm:$0xf]
    %v74 = vld [vmem:[%s0 + $0x88] sm:$0xf]
    %v75 = vld [vmem:[%s0 + $0x8c] sm:$0xf]
    %v76 = vld [vmem:[%s2] sm:$0xf]
    %v77 = vld [vmem:[%s2 + $0x4] sm:$0xf]
    %v78 = vld [vmem:[%s2 + $0x8] sm:$0xf]
    %v79 = vld [vmem:[%s2 + $0xc] sm:$0xf]
    %v80 = vld [vmem:[%s2 + $0x10] sm:$0xf]
    %v81 = vld [vmem:[%s2 + $0x14] sm:$0xf]
    %v82 = vld [vmem:[%s2 + $0x18] sm:$0x7]
    %v83 = vld [vmem:[%s3] sm:$0x1]
    %v85 = vlaneseq
    %v86 = vshrl.u32 %v85, 7
    %v87 = vsub.s32 0, %v86
    %v88 = vrot.slane %v83, %v87
    %v126 = vunpack.c.l.b16 %v40
    %v127 = vunpack.c.l.b16 %v41
    %v128 = vunpack.c.l.b16 %v42
    %v129 = vunpack.c.l.b16 %v43
    %v130 = vunpack.c.l.b16 %v44
    %v131 = vunpack.c.l.b16 %v45
    %v132 = vunpack.c.l.b16 %v46
    %v133 = vunpack.c.l.b16 %v47
    %v134 = vunpack.c.l.b16 %v48
    %v135 = vunpack.c.l.b16 %v49
    %v136 = vunpack.c.l.b16 %v50
    %v137 = vunpack.c.l.b16 %v51
    %v138 = vunpack.c.l.b16 %v52
    %v139 = vunpack.c.l.b16 %v53
    %v140 = vunpack.c.l.b16 %v54
    %v141 = vunpack.c.l.b16 %v55
    %v142 = vunpack.c.l.b16 %v56
    %v143 = vunpack.c.l.b16 %v57
    %v144 = vunpack.c.l.b16 %v58
    %v145 = vunpack.c.l.b16 %v59
    %v146 = vunpack.c.l.b16 %v60
    %v147 = vunpack.c.l.b16 %v61
    %v148 = vunpack.c.l.b16 %v62
    %v149 = vunpack.c.l.b16 %v63
    %v150 = vunpack.c.l.b16 %v64
    %v151 = vunpack.c.l.b16 %v65
    %v152 = vunpack.c.l.b16 %v66
    %v153 = vunpack.c.l.b16 %v67
    %v154 = vunpack.c.l.b16 %v68
    %v155 = vunpack.c.l.b16 %v69
    %v156 = vunpack.c.l.b16 %v70
    %v157 = vunpack.c.l.b16 %v71
    %v158 = vunpack.c.l.b16 %v72
    %v159 = vunpack.c.l.b16 %v73
    %v160 = vunpack.c.l.b16 %v74
    %v161 = vunpack.c.l.b16 %v75
    %v162 = vpack.c.b16 %v127, %v126
    %v163 = vpack.c.b16 %v129, %v128
    %v164 = vpack.c.b16 %v131, %v130
    %v165 = vpack.c.b16 %v133, %v132
    %v166 = vpack.c.b16 %v135, %v134
    %v167 = vpack.c.b16 %v137, %v136
    %v168 = vpack.c.b16 %v139, %v138
    %v169 = vpack.c.b16 %v141, %v140
    %v170 = vpack.c.b16 %v143, %v142
    %v171 = vpack.c.b16 %v145, %v144
    %v172 = vpack.c.b16 %v147, %v146
    %v173 = vpack.c.b16 %v149, %v148
    %v174 = vpack.c.b16 %v151, %v150
    %v175 = vpack.c.b16 %v153, %v152
    %v176 = vpack.c.b16 %v155, %v154
    %v177 = vpack.c.b16 %v157, %v156
    %v178 = vpack.c.b16 %v159, %v158
    %v179 = vpack.c.b16 %v161, %v160
    %v187 = vunpack.c.l.b16 %v76
    %v188 = vunpack.c.l.b16 %v77
    %v189 = vunpack.c.l.b16 %v78
    %v190 = vunpack.c.l.b16 %v79
    %v191 = vunpack.c.l.b16 %v80
    %v192 = vunpack.c.l.b16 %v81
    %v193 = vunpack.c.l.b16 %v82
    %v194 = vpack.c.b16 %v188, %v187
    %v195 = vpack.c.b16 %v190, %v189
    %v196 = vpack.c.b16 %v192, %v191
    %v197 = vpack.c.b16 %v193, %v193
    %vm201 = vcmask 441344
    %v203 = vsel %vm201, %v162, 0
    %v206 = vsel %vm201, %v163, 0
    %v209 = vsel %vm201, %v164, 0
    %v212 = vsel %vm201, %v165, 0
    %v215 = vsel %vm201, %v166, 0
    %v218 = vsel %vm201, %v167, 0
    %v221 = vsel %vm201, %v168, 0
    %v224 = vsel %vm201, %v169, 0
    %v227 = vsel %vm201, %v170, 0
    %v230 = vsel %vm201, %v171, 0
    %v233 = vsel %vm201, %v172, 0
    %v236 = vsel %vm201, %v173, 0
    %v239 = vsel %vm201, %v174, 0
    %v242 = vsel %vm201, %v175, 0
    %v245 = vsel %vm201, %v176, 0
    %v248 = vsel %vm201, %v177, 0
    %v251 = vsel %vm201, %v178, 0
    %v254 = vsel %vm201, %v179, 0
    %vm256 = vcmask 1042432
    %v258 = vsel %vm256, %v197, 0
    %260 = vmatprep.subr.bf16.mxu0 0
    %261 = vmatpush1.bf16.msra.mxu0 %v194
    %262 = vmatprep.subr.bf16.mxu0 0
    %263 = vmatpush1.bf16.msra.mxu0 %v195
    %264 = vmatprep.subr.bf16.mxu0 0
    %265 = vmatpush1.bf16.msra.mxu0 %v196
    %266 = vmatprep.subr.bf16.mxu0 0
    %267 = vmatpush1.bf16.msra.mxu0 %v258
    %268 = vmatprep.subr.bf16.mxu0 0
    %269 = vmatpush1.bf16.msra.mxu0 0
    %270 = vmatprep.subr.bf16.mxu0 0
    %271 = vmatpush1.bf16.msra.mxu0 0
    %272 = vmatprep.subr.bf16.mxu0 0
    %273 = vmatpush1.bf16.msra.mxu0 0
    %274 = vmatprep.subr.bf16.mxu0 0
    %275 = vmatpush1.bf16.msra.mxu0 0
    %276 = vmatprep.subr.bf16.mxu0 0
    %277 = vmatpush1.bf16.msra.mxu0 0
    %278 = vmatprep.subr.bf16.mxu0 0
    %279 = vmatpush1.bf16.msra.mxu0 0
    %280 = vmatprep.subr.bf16.mxu0 0
    %281 = vmatpush1.bf16.msra.mxu0 0
    %282 = vmatprep.subr.bf16.mxu0 0
    %283 = vmatpush1.bf16.msra.mxu0 0
    %284 = vmatprep.subr.bf16.mxu0 0
    %285 = vmatpush1.bf16.msra.mxu0 0
    %286 = vmatprep.subr.bf16.mxu0 0
    %287 = vmatpush1.bf16.msra.mxu0 0
    %288 = vmatprep.subr.bf16.mxu0 0
    %289 = vmatpush1.bf16.msra.mxu0 0
    %290 = vmatprep.subr.bf16.mxu0 0
    %291 = vmatpush1.bf16.msra.mxu0 0
    %292 = vmatprep.mubr.bf16.mxu0 0
    %293 = vmatmul.mubr.bf16.gmra.mrb[0].mxu0 %v203
    %v294 = vpop.f32.mrb[0].mxu0
    %v295 = vadd.f32 %v88, %v294
    %v296 = vpop.f32.mrb[0].mxu0
    %v297 = vpop.f32.mrb[0].mxu0
    %v298 = vadd.f32 %v88, %v297
    %v299 = vpop.f32.mrb[0].mxu0
    %300 = vmatprep.mubr.bf16.mxu0 0
    %301 = vmatmul.mubr.bf16.gmra.mrb[0].mxu0 %v206
    %v302 = vpop.f32.mrb[0].mxu0
    %v303 = vadd.f32 %v88, %v302
    %v304 = vpop.f32.mrb[0].mxu0
    %v305 = vpop.f32.mrb[0].mxu0
    %v306 = vadd.f32 %v88, %v305
    %v307 = vpop.f32.mrb[0].mxu0
    %308 = vmatprep.mubr.bf16.mxu0 0
    %309 = vmatmul.mubr.bf16.gmra.mrb[0].mxu0 %v209
    %v310 = vpop.f32.mrb[0].mxu0
    %v311 = vadd.f32 %v88, %v310
    %v312 = vpop.f32.mrb[0].mxu0
    %v313 = vpop.f32.mrb[0].mxu0
    %v314 = vadd.f32 %v88, %v313
    %v315 = vpop.f32.mrb[0].mxu0
    %316 = vmatprep.mubr.bf16.mxu0 0
    %317 = vmatmul.mubr.bf16.gmra.mrb[0].mxu0 %v212
    %v318 = vpop.f32.mrb[0].mxu0
    %v319 = vadd.f32 %v88, %v318
    %v320 = vpop.f32.mrb[0].mxu0
    %v321 = vpop.f32.mrb[0].mxu0
    %v322 = vadd.f32 %v88, %v321
    %v323 = vpop.f32.mrb[0].mxu0
    %324 = vmatprep.mubr.bf16.mxu0 0
    %325 = vmatmul.mubr.bf16.gmra.mrb[0].mxu0 %v215
    %v326 = vpop.f32.mrb[0].mxu0
    %v327 = vadd.f32 %v88, %v326
    %v328 = vpop.f32.mrb[0].mxu0
    %v329 = vpop.f32.mrb[0].mxu0
    %v330 = vadd.f32 %v88, %v329
    %v331 = vpop.f32.mrb[0].mxu0
    %332 = vmatprep.mubr.bf16.mxu0 0
    %333 = vmatmul.mubr.bf16.gmra.mrb[0].mxu0 %v218
    %v334 = vpop.f32.mrb[0].mxu0
    %v335 = vadd.f32 %v88, %v334
    %v336 = vpop.f32.mrb[0].mxu0
    %v337 = vpop.f32.mrb[0].mxu0
    %v338 = vadd.f32 %v88, %v337
    %v339 = vpop.f32.mrb[0].mxu0
    %340 = vmatprep.mubr.bf16.mxu0 0
    %341 = vmatmul.mubr.bf16.gmra.mrb[0].mxu0 %v221
    %v342 = vpop.f32.mrb[0].mxu0
    %v343 = vadd.f32 %v88, %v342
    %v344 = vpop.f32.mrb[0].mxu0
    %v345 = vpop.f32.mrb[0].mxu0
    %v346 = vadd.f32 %v88, %v345
    %v347 = vpop.f32.mrb[0].mxu0
    %348 = vmatprep.mubr.bf16.mxu0 0
    %349 = vmatmul.mubr.bf16.gmra.mrb[0].mxu0 %v224
    %v350 = vpop.f32.mrb[0].mxu0
    %v351 = vadd.f32 %v88, %v350
    %v352 = vpop.f32.mrb[0].mxu0
    %v353 = vpop.f32.mrb[0].mxu0
    %v354 = vadd.f32 %v88, %v353
    %v355 = vpop.f32.mrb[0].mxu0
    %356 = vmatprep.mubr.bf16.mxu0 0
    %357 = vmatmul.mubr.bf16.gmra.mrb[0].mxu0 %v227
    %v358 = vpop.f32.mrb[0].mxu0
    %v359 = vadd.f32 %v88, %v358
    %v360 = vpop.f32.mrb[0].mxu0
    %v361 = vpop.f32.mrb[0].mxu0
    %v362 = vadd.f32 %v88, %v361
    %v363 = vpop.f32.mrb[0].mxu0
    %364 = vmatprep.mubr.bf16.mxu0 0
    %365 = vmatmul.mubr.bf16.gmra.mrb[0].mxu0 %v230
    %v366 = vpop.f32.mrb[0].mxu0
    %v367 = vadd.f32 %v88, %v366
    %v368 = vpop.f32.mrb[0].mxu0
    %v369 = vpop.f32.mrb[0].mxu0
    %v370 = vadd.f32 %v88, %v369
    %v371 = vpop.f32.mrb[0].mxu0
    %372 = vmatprep.mubr.bf16.mxu0 0
    %373 = vmatmul.mubr.bf16.gmra.mrb[0].mxu0 %v233
    %v374 = vpop.f32.mrb[0].mxu0
    %v375 = vadd.f32 %v88, %v374
    %v376 = vpop.f32.mrb[0].mxu0
    %v377 = vpop.f32.mrb[0].mxu0
    %v378 = vadd.f32 %v88, %v377
    %v379 = vpop.f32.mrb[0].mxu0
    %380 = vmatprep.mubr.bf16.mxu0 0
    %381 = vmatmul.mubr.bf16.gmra.mrb[0].mxu0 %v236
    %v382 = vpop.f32.mrb[0].mxu0
    %v383 = vadd.f32 %v88, %v382
    %v384 = vpop.f32.mrb[0].mxu0
    %v385 = vpop.f32.mrb[0].mxu0
    %v386 = vadd.f32 %v88, %v385
    %v387 = vpop.f32.mrb[0].mxu0
    %388 = vmatprep.mubr.bf16.mxu0 0
    %389 = vmatmul.mubr.bf16.gmra.mrb[0].mxu0 %v239
    %v390 = vpop.f32.mrb[0].mxu0
    %v391 = vadd.f32 %v88, %v390
    %v392 = vpop.f32.mrb[0].mxu0
    %v393 = vpop.f32.mrb[0].mxu0
    %v394 = vadd.f32 %v88, %v393
    %v395 = vpop.f32.mrb[0].mxu0
    %396 = vmatprep.mubr.bf16.mxu0 0
    %397 = vmatmul.mubr.bf16.gmra.mrb[0].mxu0 %v242
    %v398 = vpop.f32.mrb[0].mxu0
    %v399 = vadd.f32 %v88, %v398
    %v400 = vpop.f32.mrb[0].mxu0
    %v401 = vpop.f32.mrb[0].mxu0
    %v402 = vadd.f32 %v88, %v401
    %v403 = vpop.f32.mrb[0].mxu0
    %404 = vmatprep.mubr.bf16.mxu0 0
    %405 = vmatmul.mubr.bf16.gmra.mrb[0].mxu0 %v245
    %v406 = vpop.f32.mrb[0].mxu0
    %v407 = vadd.f32 %v88, %v406
    %v408 = vpop.f32.mrb[0].mxu0
    %v409 = vpop.f32.mrb[0].mxu0
    %v410 = vadd.f32 %v88, %v409
    %v411 = vpop.f32.mrb[0].mxu0
    %412 = vmatprep.mubr.bf16.mxu0 0
    %413 = vmatmul.mubr.bf16.gmra.mrb[0].mxu0 %v248
    %v414 = vpop.f32.mrb[0].mxu0
    %v415 = vadd.f32 %v88, %v414
    %v416 = vpop.f32.mrb[0].mxu0
    %v417 = vpop.f32.mrb[0].mxu0
    %v418 = vadd.f32 %v88, %v417
    %v419 = vpop.f32.mrb[0].mxu0
    %420 = vmatprep.mubr.bf16.mxu0 0
    %421 = vmatmul.mubr.bf16.gmra.mrb[0].mxu0 %v251
    %v422 = vpop.f32.mrb[0].mxu0
    %v423 = vadd.f32 %v88, %v422
    %v424 = vpop.f32.mrb[0].mxu0
    %v425 = vpop.f32.mrb[0].mxu0
    %v426 = vadd.f32 %v88, %v425
    %v427 = vpop.f32.mrb[0].mxu0
    %428 = vmatprep.mubr.bf16.mxu0 0
    %429 = vmatmul.mubr.bf16.gmra.mrb[0].mxu0 %v254
    %v430 = vpop.f32.mrb[0].mxu0
    %v431 = vadd.f32 %v88, %v430
    %v432 = vpop.f32.mrb[0].mxu0
    %v433 = vpop.f32.mrb[0].mxu0
    %v434 = vadd.f32 %v88, %v433
    %v435 = vpop.f32.mrb[0].mxu0
    %436 = vdwg.mxu0
    %v437 = vmax.f32 %v295, 0.0
    %v438 = vmax.f32 %v298, 0.0
    %v439 = vmax.f32 %v303, 0.0
    %v440 = vmax.f32 %v306, 0.0
    %v441 = vmax.f32 %v311, 0.0
    %v442 = vmax.f32 %v314, 0.0
    %v443 = vmax.f32 %v319, 0.0
    %v444 = vmax.f32 %v322, 0.0
    %v445 = vmax.f32 %v327, 0.0
    %v446 = vmax.f32 %v330, 0.0
    %v447 = vmax.f32 %v335, 0.0
    %v448 = vmax.f32 %v338, 0.0
    %v449 = vmax.f32 %v343, 0.0
    %v450 = vmax.f32 %v346, 0.0
    %v451 = vmax.f32 %v351, 0.0
    %v452 = vmax.f32 %v354, 0.0
    %v453 = vmax.f32 %v359, 0.0
    %v454 = vmax.f32 %v362, 0.0
    %v455 = vmax.f32 %v367, 0.0
    %v456 = vmax.f32 %v370, 0.0
    %v457 = vmax.f32 %v375, 0.0
    %v458 = vmax.f32 %v378, 0.0
    %v459 = vmax.f32 %v383, 0.0
    %v460 = vmax.f32 %v386, 0.0
    %v461 = vmax.f32 %v391, 0.0
    %v462 = vmax.f32 %v394, 0.0
    %v463 = vmax.f32 %v399, 0.0
    %v464 = vmax.f32 %v402, 0.0
    %v465 = vmax.f32 %v407, 0.0
    %v466 = vmax.f32 %v410, 0.0
    %v467 = vmax.f32 %v415, 0.0
    %v468 = vmax.f32 %v418, 0.0
    %v469 = vmax.f32 %v423, 0.0
    %v470 = vmax.f32 %v426, 0.0
    %v471 = vmax.f32 %v431, 0.0
    %v472 = vmax.f32 %v434, 0.0
    %v473 = vpack.c.bf16 %v438, %v437
    %v474 = vpack.c.bf16 %v440, %v439
    %v475 = vpack.c.bf16 %v442, %v441
    %v476 = vpack.c.bf16 %v444, %v443
    %v477 = vpack.c.bf16 %v446, %v445
    %v478 = vpack.c.bf16 %v448, %v447
    %v479 = vpack.c.bf16 %v450, %v449
    %v480 = vpack.c.bf16 %v452, %v451
    %v481 = vpack.c.bf16 %v454, %v453
    %v482 = vpack.c.bf16 %v456, %v455
    %v483 = vpack.c.bf16 %v458, %v457
    %v484 = vpack.c.bf16 %v460, %v459
    %v485 = vpack.c.bf16 %v462, %v461
    %v486 = vpack.c.bf16 %v464, %v463
    %v487 = vpack.c.bf16 %v466, %v465
    %v488 = vpack.c.bf16 %v468, %v467
    %v489 = vpack.c.bf16 %v470, %v469
    %v490 = vpack.c.bf16 %v472, %v471
    %v491 = vld [vmem:[%s4] sm:$0xf]
    %v492 = vld [vmem:[%s4 + $0x4] sm:$0xf]
    %s493 = scalar_lea.vmem %s4, 8
    %v494 = vld [vmem:[%s493] sm:$0xf]
    %v495 = vld [vmem:[%s493 + $0x4] sm:$0xf]
    %v498 = vunpack.c.l.b16 %v494
    %v499 = vunpack.c.l.b16 %v495
    %v500 = vpack.c.b16 %v499, %v498
    %vm502 = vcmask 130048
    %v504 = vsel %vm502, %v475, 0
    %v507 = vsel %vm502, %v476, 0
    %509 = vmatprep.subr.bf16.mxu0 0
    %510 = vmatpush1.bf16.msra.mxu0 %v500
    %511 = vmatprep.subr.bf16.mxu0 0
    %512 = vmatpush1.bf16.msra.mxu0 0
    %513 = vmatprep.subr.bf16.mxu0 0
    %514 = vmatpush1.bf16.msra.mxu0 0
    %515 = vmatprep.subr.bf16.mxu0 0
    %516 = vmatpush1.bf16.msra.mxu0 0
    %517 = vmatprep.subr.bf16.mxu0 0
    %518 = vmatpush1.bf16.msra.mxu0 0
    %519 = vmatprep.subr.bf16.mxu0 0
    %520 = vmatpush1.bf16.msra.mxu0 0
    %521 = vmatprep.subr.bf16.mxu0 0
    %522 = vmatpush1.bf16.msra.mxu0 0
    %523 = vmatprep.subr.bf16.mxu0 0
    %524 = vmatpush1.bf16.msra.mxu0 0
    %525 = vmatprep.subr.bf16.mxu0 0
    %526 = vmatpush1.bf16.msra.mxu0 0
    %527 = vmatprep.subr.bf16.mxu0 0
    %528 = vmatpush1.bf16.msra.mxu0 0
    %529 = vmatprep.subr.bf16.mxu0 0
    %530 = vmatpush1.bf16.msra.mxu0 0
    %531 = vmatprep.subr.bf16.mxu0 0
    %532 = vmatpush1.bf16.msra.mxu0 0
    %533 = vmatprep.subr.bf16.mxu0 0
    %534 = vmatpush1.bf16.msra.mxu0 0
    %535 = vmatprep.subr.bf16.mxu0 0
    %536 = vmatpush1.bf16.msra.mxu0 0
    %537 = vmatprep.subr.bf16.mxu0 0
    %538 = vmatpush1.bf16.msra.mxu0 0
    %539 = vmatprep.subr.bf16.mxu0 0
    %540 = vmatpush1.bf16.msra.mxu0 0
    %541 = vmatprep.mubr.bf16.mxu0 0
    %542 = vmatmul.mubr.bf16.gmra.mrb[0].mxu0 %v504
    %v543 = vpop.f32.mrb[0].mxu0
    %v544 = vadd.f32 0.0, %v543
    %v545 = vpop.f32.mrb[0].mxu0
    %v546 = vpop.f32.mrb[0].mxu0
    %v547 = vadd.f32 0.0, %v546
    %v548 = vpop.f32.mrb[0].mxu0
    %549 = vmatprep.mubr.bf16.mxu0 0
    %550 = vmatmul.mubr.bf16.gmra.mrb[0].mxu0 %v507
    %v551 = vpop.f32.mrb[0].mxu0
    %v552 = vadd.f32 0.0, %v551
    %v553 = vpop.f32.mrb[0].mxu0
    %v554 = vpop.f32.mrb[0].mxu0
    %v555 = vadd.f32 0.0, %v554
    %v556 = vpop.f32.mrb[0].mxu0
    %557 = vdwg.mxu0
    %v560 = vunpack.c.l.b16 %v491
    %v561 = vunpack.c.l.b16 %v492
    %v562 = vpack.c.b16 %v561, %v560
    %v565 = vsel %vm502, %v473, 0
    %v568 = vsel %vm502, %v474, 0
    %570 = vmatprep.subr.bf16.mxu0 0
    %571 = vmatpush1.bf16.msra.mxu0 %v562
    %572 = vmatprep.subr.bf16.mxu0 0
    %573 = vmatpush1.bf16.msra.mxu0 0
    %574 = vmatprep.subr.bf16.mxu0 0
    %575 = vmatpush1.bf16.msra.mxu0 0
    %576 = vmatprep.subr.bf16.mxu0 0
    %577 = vmatpush1.bf16.msra.mxu0 0
    %578 = vmatprep.subr.bf16.mxu0 0
    %579 = vmatpush1.bf16.msra.mxu0 0
    %580 = vmatprep.subr.bf16.mxu0 0
    %581 = vmatpush1.bf16.msra.mxu0 0
    %582 = vmatprep.subr.bf16.mxu0 0
    %583 = vmatpush1.bf16.msra.mxu0 0
    %584 = vmatprep.subr.bf16.mxu0 0
    %585 = vmatpush1.bf16.msra.mxu0 0
    %586 = vmatprep.subr.bf16.mxu0 0
    %587 = vmatpush1.bf16.msra.mxu0 0
    %588 = vmatprep.subr.bf16.mxu0 0
    %589 = vmatpush1.bf16.msra.mxu0 0
    %590 = vmatprep.subr.bf16.mxu0 0
    %591 = vmatpush1.bf16.msra.mxu0 0
    %592 = vmatprep.subr.bf16.mxu0 0
    %593 = vmatpush1.bf16.msra.mxu0 0
    %594 = vmatprep.subr.bf16.mxu0 0
    %595 = vmatpush1.bf16.msra.mxu0 0
    %596 = vmatprep.subr.bf16.mxu0 0
    %597 = vmatpush1.bf16.msra.mxu0 0
    %598 = vmatprep.subr.bf16.mxu0 0
    %599 = vmatpush1.bf16.msra.mxu0 0
    %600 = vmatprep.subr.bf16.mxu0 0
    %601 = vmatpush1.bf16.msra.mxu0 0
    %602 = vmatprep.mubr.bf16.mxu0 0
    %603 = vmatmul.mubr.bf16.gmra.mrb[0].mxu0 %v565
    %v604 = vpop.f32.mrb[0].mxu0
    %v605 = vadd.f32 %v544, %v604
    %v606 = vpop.f32.mrb[0].mxu0
    %v607 = vpop.f32.mrb[0].mxu0
    %v608 = vadd.f32 %v547, %v607
    %v609 = vpop.f32.mrb[0].mxu0
    %610 = vmatprep.mubr.bf16.mxu0 0
    %611 = vmatmul.mubr.bf16.gmra.mrb[0].mxu0 %v568
    %v612 = vpop.f32.mrb[0].mxu0
    %v613 = vadd.f32 %v552, %v612
    %v614 = vpop.f32.mrb[0].mxu0
    %v615 = vpop.f32.mrb[0].mxu0
    %v616 = vadd.f32 %v555, %v615
    %v617 = vpop.f32.mrb[0].mxu0
    %618 = vdwg.mxu0
    %s619 = scalar_lea.vmem %s4, 16
    %v620 = vld [vmem:[%s619] sm:$0xf]
    %v621 = vld [vmem:[%s619 + $0x4] sm:$0xf]
    %v624 = vunpack.c.l.b16 %v620
    %v625 = vunpack.c.l.b16 %v621
    %v626 = vpack.c.b16 %v625, %v624
    %v629 = vsel %vm502, %v477, 0
    %v632 = vsel %vm502, %v478, 0
    %634 = vmatprep.subr.bf16.mxu0 0
    %635 = vmatpush1.bf16.msra.mxu0 %v626
    %636 = vmatprep.subr.bf16.mxu0 0
    %637 = vmatpush1.bf16.msra.mxu0 0
    %638 = vmatprep.subr.bf16.mxu0 0
    %639 = vmatpush1.bf16.msra.mxu0 0
    %640 = vmatprep.subr.bf16.mxu0 0
    %641 = vmatpush1.bf16.msra.mxu0 0
    %642 = vmatprep.subr.bf16.mxu0 0
    %643 = vmatpush1.bf16.msra.mxu0 0
    %644 = vmatprep.subr.bf16.mxu0 0
    %645 = vmatpush1.bf16.msra.mxu0 0
    %646 = vmatprep.subr.bf16.mxu0 0
    %647 = vmatpush1.bf16.msra.mxu0 0
    %648 = vmatprep.subr.bf16.mxu0 0
    %649 = vmatpush1.bf16.msra.mxu0 0
    %650 = vmatprep.subr.bf16.mxu0 0
    %651 = vmatpush1.bf16.msra.mxu0 0
    %652 = vmatprep.subr.bf16.mxu0 0
    %653 = vmatpush1.bf16.msra.mxu0 0
    %654 = vmatprep.subr.bf16.mxu0 0
    %655 = vmatpush1.bf16.msra.mxu0 0
    %656 = vmatprep.subr.bf16.mxu0 0
    %657 = vmatpush1.bf16.msra.mxu0 0
    %658 = vmatprep.subr.bf16.mxu0 0
    %659 = vmatpush1.bf16.msra.mxu0 0
    %660 = vmatprep.subr.bf16.mxu0 0
    %661 = vmatpush1.bf16.msra.mxu0 0
    %662 = vmatprep.subr.bf16.mxu0 0
    %663 = vmatpush1.bf16.msra.mxu0 0
    %664 = vmatprep.subr.bf16.mxu0 0
    %665 = vmatpush1.bf16.msra.mxu0 0
    %666 = vmatprep.mubr.bf16.mxu0 0
    %667 = vmatmul.mubr.bf16.gmra.mrb[0].mxu0 %v629
    %v668 = vpop.f32.mrb[0].mxu0
    %v669 = vadd.f32 0.0, %v668
    %v670 = vpop.f32.mrb[0].mxu0
    %v671 = vpop.f32.mrb[0].mxu0
    %v672 = vadd.f32 0.0, %v671
    %v673 = vpop.f32.mrb[0].mxu0
    %674 = vmatprep.mubr.bf16.mxu0 0
    %675 = vmatmul.mubr.bf16.gmra.mrb[0].mxu0 %v632
    %v676 = vpop.f32.mrb[0].mxu0
    %v677 = vadd.f32 0.0, %v676
    %v678 = vpop.f32.mrb[0].mxu0
    %v679 = vpop.f32.mrb[0].mxu0
    %v680 = vadd.f32 0.0, %v679
    %v681 = vpop.f32.mrb[0].mxu0
    %682 = vdwg.mxu0
    %v683 = vadd.f32 %v605, %v669
    %v684 = vadd.f32 %v608, %v672
    %v685 = vadd.f32 %v613, %v677
    %v686 = vadd.f32 %v616, %v680
    %s687 = scalar_lea.vmem %s4, 24
    %v688 = vld [vmem:[%s687] sm:$0xf]
    %v689 = vld [vmem:[%s687 + $0x4] sm:$0xf]
    %v692 = vunpack.c.l.b16 %v688
    %v693 = vunpack.c.l.b16 %v689
    %v694 = vpack.c.b16 %v693, %v692
    %v697 = vsel %vm502, %v479, 0
    %v700 = vsel %vm502, %v480, 0
    %702 = vmatprep.subr.bf16.mxu0 0
    %703 = vmatpush1.bf16.msra.mxu0 %v694
    %704 = vmatprep.subr.bf16.mxu0 0
    %705 = vmatpush1.bf16.msra.mxu0 0
    %706 = vmatprep.subr.bf16.mxu0 0
    %707 = vmatpush1.bf16.msra.mxu0 0
    %708 = vmatprep.subr.bf16.mxu0 0
    %709 = vmatpush1.bf16.msra.mxu0 0
    %710 = vmatprep.subr.bf16.mxu0 0
    %711 = vmatpush1.bf16.msra.mxu0 0
    %712 = vmatprep.subr.bf16.mxu0 0
    %713 = vmatpush1.bf16.msra.mxu0 0
    %714 = vmatprep.subr.bf16.mxu0 0
    %715 = vmatpush1.bf16.msra.mxu0 0
    %716 = vmatprep.subr.bf16.mxu0 0
    %717 = vmatpush1.bf16.msra.mxu0 0
    %718 = vmatprep.subr.bf16.mxu0 0
    %719 = vmatpush1.bf16.msra.mxu0 0
    %720 = vmatprep.subr.bf16.mxu0 0
    %721 = vmatpush1.bf16.msra.mxu0 0
    %722 = vmatprep.subr.bf16.mxu0 0
    %723 = vmatpush1.bf16.msra.mxu0 0
    %724 = vmatprep.subr.bf16.mxu0 0
    %725 = vmatpush1.bf16.msra.mxu0 0
    %726 = vmatprep.subr.bf16.mxu0 0
    %727 = vmatpush1.bf16.msra.mxu0 0
    %728 = vmatprep.subr.bf16.mxu0 0
    %729 = vmatpush1.bf16.msra.mxu0 0
    %730 = vmatprep.subr.bf16.mxu0 0
    %731 = vmatpush1.bf16.msra.mxu0 0
    %732 = vmatprep.subr.bf16.mxu0 0
    %733 = vmatpush1.bf16.msra.mxu0 0
    %734 = vmatprep.mubr.bf16.mxu0 0
    %735 = vmatmul.mubr.bf16.gmra.mrb[0].mxu0 %v697
    %v736 = vpop.f32.mrb[0].mxu0
    %v737 = vadd.f32 0.0, %v736
    %v738 = vpop.f32.mrb[0].mxu0
    %v739 = vpop.f32.mrb[0].mxu0
    %v740 = vadd.f32 0.0, %v739
    %v741 = vpop.f32.mrb[0].mxu0
    %742 = vmatprep.mubr.bf16.mxu0 0
    %743 = vmatmul.mubr.bf16.gmra.mrb[0].mxu0 %v700
    %v744 = vpop.f32.mrb[0].mxu0
    %v745 = vadd.f32 0.0, %v744
    %v746 = vpop.f32.mrb[0].mxu0
    %v747 = vpop.f32.mrb[0].mxu0
    %v748 = vadd.f32 0.0, %v747
    %v749 = vpop.f32.mrb[0].mxu0
    %750 = vdwg.mxu0
    %v751 = vadd.f32 %v683, %v737
    %v752 = vadd.f32 %v684, %v740
    %v753 = vadd.f32 %v685, %v745
    %v754 = vadd.f32 %v686, %v748
    %s755 = scalar_lea.vmem %s4, 32
    %v756 = vld [vmem:[%s755] sm:$0xf]
    %v757 = vld [vmem:[%s755 + $0x4] sm:$0xf]
    %v760 = vunpack.c.l.b16 %v756
    %v761 = vunpack.c.l.b16 %v757
    %v762 = vpack.c.b16 %v761, %v760
    %v765 = vsel %vm502, %v481, 0
    %v768 = vsel %vm502, %v482, 0
    %770 = vmatprep.subr.bf16.mxu0 0
    %771 = vmatpush1.bf16.msra.mxu0 %v762
    %772 = vmatprep.subr.bf16.mxu0 0
    %773 = vmatpush1.bf16.msra.mxu0 0
    %774 = vmatprep.subr.bf16.mxu0 0
    %775 = vmatpush1.bf16.msra.mxu0 0
    %776 = vmatprep.subr.bf16.mxu0 0
    %777 = vmatpush1.bf16.msra.mxu0 0
    %778 = vmatprep.subr.bf16.mxu0 0
    %779 = vmatpush1.bf16.msra.mxu0 0
    %780 = vmatprep.subr.bf16.mxu0 0
    %781 = vmatpush1.bf16.msra.mxu0 0
    %782 = vmatprep.subr.bf16.mxu0 0
    %783 = vmatpush1.bf16.msra.mxu0 0
    %784 = vmatprep.subr.bf16.mxu0 0
    %785 = vmatpush1.bf16.msra.mxu0 0
    %786 = vmatprep.subr.bf16.mxu0 0
    %787 = vmatpush1.bf16.msra.mxu0 0
    %788 = vmatprep.subr.bf16.mxu0 0
    %789 = vmatpush1.bf16.msra.mxu0 0
    %790 = vmatprep.subr.bf16.mxu0 0
    %791 = vmatpush1.bf16.msra.mxu0 0
    %792 = vmatprep.subr.bf16.mxu0 0
    %793 = vmatpush1.bf16.msra.mxu0 0
    %794 = vmatprep.subr.bf16.mxu0 0
    %795 = vmatpush1.bf16.msra.mxu0 0
    %796 = vmatprep.subr.bf16.mxu0 0
    %797 = vmatpush1.bf16.msra.mxu0 0
    %798 = vmatprep.subr.bf16.mxu0 0
    %799 = vmatpush1.bf16.msra.mxu0 0
    %800 = vmatprep.subr.bf16.mxu0 0
    %801 = vmatpush1.bf16.msra.mxu0 0
    %802 = vmatprep.mubr.bf16.mxu0 0
    %803 = vmatmul.mubr.bf16.gmra.mrb[0].mxu0 %v765
    %v804 = vpop.f32.mrb[0].mxu0
    %v805 = vadd.f32 0.0, %v804
    %v806 = vpop.f32.mrb[0].mxu0
    %v807 = vpop.f32.mrb[0].mxu0
    %v808 = vadd.f32 0.0, %v807
    %v809 = vpop.f32.mrb[0].mxu0
    %810 = vmatprep.mubr.bf16.mxu0 0
    %811 = vmatmul.mubr.bf16.gmra.mrb[0].mxu0 %v768
    %v812 = vpop.f32.mrb[0].mxu0
    %v813 = vadd.f32 0.0, %v812
    %v814 = vpop.f32.mrb[0].mxu0
    %v815 = vpop.f32.mrb[0].mxu0
    %v816 = vadd.f32 0.0, %v815
    %v817 = vpop.f32.mrb[0].mxu0
    %818 = vdwg.mxu0
    %v819 = vadd.f32 %v751, %v805
    %v820 = vadd.f32 %v752, %v808
    %v821 = vadd.f32 %v753, %v813
    %v822 = vadd.f32 %v754, %v816
    %s823 = scalar_lea.vmem %s4, 40
    %v824 = vld [vmem:[%s823] sm:$0xf]
    %v825 = vld [vmem:[%s823 + $0x4] sm:$0xf]
    %v828 = vunpack.c.l.b16 %v824
    %v829 = vunpack.c.l.b16 %v825
    %v830 = vpack.c.b16 %v829, %v828
    %v833 = vsel %vm502, %v483, 0
    %v836 = vsel %vm502, %v484, 0
    %838 = vmatprep.subr.bf16.mxu0 0
    %839 = vmatpush1.bf16.msra.mxu0 %v830
    %840 = vmatprep.subr.bf16.mxu0 0
    %841 = vmatpush1.bf16.msra.mxu0 0
    %842 = vmatprep.subr.bf16.mxu0 0
    %843 = vmatpush1.bf16.msra.mxu0 0
    %844 = vmatprep.subr.bf16.mxu0 0
    %845 = vmatpush1.bf16.msra.mxu0 0
    %846 = vmatprep.subr.bf16.mxu0 0
    %847 = vmatpush1.bf16.msra.mxu0 0
    %848 = vmatprep.subr.bf16.mxu0 0
    %849 = vmatpush1.bf16.msra.mxu0 0
    %850 = vmatprep.subr.bf16.mxu0 0
    %851 = vmatpush1.bf16.msra.mxu0 0
    %852 = vmatprep.subr.bf16.mxu0 0
    %853 = vmatpush1.bf16.msra.mxu0 0
    %854 = vmatprep.subr.bf16.mxu0 0
    %855 = vmatpush1.bf16.msra.mxu0 0
    %856 = vmatprep.subr.bf16.mxu0 0
    %857 = vmatpush1.bf16.msra.mxu0 0
    %858 = vmatprep.subr.bf16.mxu0 0
    %859 = vmatpush1.bf16.msra.mxu0 0
    %860 = vmatprep.subr.bf16.mxu0 0
    %861 = vmatpush1.bf16.msra.mxu0 0
    %862 = vmatprep.subr.bf16.mxu0 0
    %863 = vmatpush1.bf16.msra.mxu0 0
    %864 = vmatprep.subr.bf16.mxu0 0
    %865 = vmatpush1.bf16.msra.mxu0 0
    %866 = vmatprep.subr.bf16.mxu0 0
    %867 = vmatpush1.bf16.msra.mxu0 0
    %868 = vmatprep.subr.bf16.mxu0 0
    %869 = vmatpush1.bf16.msra.mxu0 0
    %870 = vmatprep.mubr.bf16.mxu0 0
    %871 = vmatmul.mubr.bf16.gmra.mrb[0].mxu0 %v833
    %v872 = vpop.f32.mrb[0].mxu0
    %v873 = vadd.f32 0.0, %v872
    %v874 = vpop.f32.mrb[0].mxu0
    %v875 = vpop.f32.mrb[0].mxu0
    %v876 = vadd.f32 0.0, %v875
    %v877 = vpop.f32.mrb[0].mxu0
    %878 = vmatprep.mubr.bf16.mxu0 0
    %879 = vmatmul.mubr.bf16.gmra.mrb[0].mxu0 %v836
    %v880 = vpop.f32.mrb[0].mxu0
    %v881 = vadd.f32 0.0, %v880
    %v882 = vpop.f32.mrb[0].mxu0
    %v883 = vpop.f32.mrb[0].mxu0
    %v884 = vadd.f32 0.0, %v883
    %v885 = vpop.f32.mrb[0].mxu0
    %886 = vdwg.mxu0
    %v887 = vadd.f32 %v819, %v873
    %v888 = vadd.f32 %v820, %v876
    %v889 = vadd.f32 %v821, %v881
    %v890 = vadd.f32 %v822, %v884
    %s891 = scalar_lea.vmem %s4, 48
    %v892 = vld [vmem:[%s891] sm:$0xf]
    %v893 = vld [vmem:[%s891 + $0x4] sm:$0xf]
    %v896 = vunpack.c.l.b16 %v892
    %v897 = vunpack.c.l.b16 %v893
    %v898 = vpack.c.b16 %v897, %v896
    %v901 = vsel %vm502, %v485, 0
    %v904 = vsel %vm502, %v486, 0
    %906 = vmatprep.subr.bf16.mxu0 0
    %907 = vmatpush1.bf16.msra.mxu0 %v898
    %908 = vmatprep.subr.bf16.mxu0 0
    %909 = vmatpush1.bf16.msra.mxu0 0
    %910 = vmatprep.subr.bf16.mxu0 0
    %911 = vmatpush1.bf16.msra.mxu0 0
    %912 = vmatprep.subr.bf16.mxu0 0
    %913 = vmatpush1.bf16.msra.mxu0 0
    %914 = vmatprep.subr.bf16.mxu0 0
    %915 = vmatpush1.bf16.msra.mxu0 0
    %916 = vmatprep.subr.bf16.mxu0 0
    %917 = vmatpush1.bf16.msra.mxu0 0
    %918 = vmatprep.subr.bf16.mxu0 0
    %919 = vmatpush1.bf16.msra.mxu0 0
    %920 = vmatprep.subr.bf16.mxu0 0
    %921 = vmatpush1.bf16.msra.mxu0 0
    %922 = vmatprep.subr.bf16.mxu0 0
    %923 = vmatpush1.bf16.msra.mxu0 0
    %924 = vmatprep.subr.bf16.mxu0 0
    %925 = vmatpush1.bf16.msra.mxu0 0
    %926 = vmatprep.subr.bf16.mxu0 0
    %927 = vmatpush1.bf16.msra.mxu0 0
    %928 = vmatprep.subr.bf16.mxu0 0
    %929 = vmatpush1.bf16.msra.mxu0 0
    %930 = vmatprep.subr.bf16.mxu0 0
    %931 = vmatpush1.bf16.msra.mxu0 0
    %932 = vmatprep.subr.bf16.mxu0 0
    %933 = vmatpush1.bf16.msra.mxu0 0
    %934 = vmatprep.subr.bf16.mxu0 0
    %935 = vmatpush1.bf16.msra.mxu0 0
    %936 = vmatprep.subr.bf16.mxu0 0
    %937 = vmatpush1.bf16.msra.mxu0 0
    %938 = vmatprep.mubr.bf16.mxu0 0
    %939 = vmatmul.mubr.bf16.gmra.mrb[0].mxu0 %v901
    %v940 = vpop.f32.mrb[0].mxu0
    %v941 = vadd.f32 0.0, %v940
    %v942 = vpop.f32.mrb[0].mxu0
    %v943 = vpop.f32.mrb[0].mxu0
    %v944 = vadd.f32 0.0, %v943
    %v945 = vpop.f32.mrb[0].mxu0
    %946 = vmatprep.mubr.bf16.mxu0 0
    %947 = vmatmul.mubr.bf16.gmra.mrb[0].mxu0 %v904
    %v948 = vpop.f32.mrb[0].mxu0
    %v949 = vadd.f32 0.0, %v948
    %v950 = vpop.f32.mrb[0].mxu0
    %v951 = vpop.f32.mrb[0].mxu0
    %v952 = vadd.f32 0.0, %v951
    %v953 = vpop.f32.mrb[0].mxu0
    %954 = vdwg.mxu0
    %v955 = vadd.f32 %v887, %v941
    %v956 = vadd.f32 %v888, %v944
    %v957 = vadd.f32 %v889, %v949
    %v958 = vadd.f32 %v890, %v952
    %s959 = scalar_lea.vmem %s4, 56
    %v960 = vld [vmem:[%s959] sm:$0xf]
    %v961 = vld [vmem:[%s959 + $0x4] sm:$0xf]
    %v964 = vunpack.c.l.b16 %v960
    %v965 = vunpack.c.l.b16 %v961
    %v966 = vpack.c.b16 %v965, %v964
    %v969 = vsel %vm502, %v487, 0
    %v972 = vsel %vm502, %v488, 0
    %974 = vmatprep.subr.bf16.mxu0 0
    %975 = vmatpush1.bf16.msra.mxu0 %v966
    %976 = vmatprep.subr.bf16.mxu0 0
    %977 = vmatpush1.bf16.msra.mxu0 0
    %978 = vmatprep.subr.bf16.mxu0 0
    %979 = vmatpush1.bf16.msra.mxu0 0
    %980 = vmatprep.subr.bf16.mxu0 0
    %981 = vmatpush1.bf16.msra.mxu0 0
    %982 = vmatprep.subr.bf16.mxu0 0
    %983 = vmatpush1.bf16.msra.mxu0 0
    %984 = vmatprep.subr.bf16.mxu0 0
    %985 = vmatpush1.bf16.msra.mxu0 0
    %986 = vmatprep.subr.bf16.mxu0 0
    %987 = vmatpush1.bf16.msra.mxu0 0
    %988 = vmatprep.subr.bf16.mxu0 0
    %989 = vmatpush1.bf16.msra.mxu0 0
    %990 = vmatprep.subr.bf16.mxu0 0
    %991 = vmatpush1.bf16.msra.mxu0 0
    %992 = vmatprep.subr.bf16.mxu0 0
    %993 = vmatpush1.bf16.msra.mxu0 0
    %994 = vmatprep.subr.bf16.mxu0 0
    %995 = vmatpush1.bf16.msra.mxu0 0
    %996 = vmatprep.subr.bf16.mxu0 0
    %997 = vmatpush1.bf16.msra.mxu0 0
    %998 = vmatprep.subr.bf16.mxu0 0
    %999 = vmatpush1.bf16.msra.mxu0 0
    %1000 = vmatprep.subr.bf16.mxu0 0
    %1001 = vmatpush1.bf16.msra.mxu0 0
    %1002 = vmatprep.subr.bf16.mxu0 0
    %1003 = vmatpush1.bf16.msra.mxu0 0
    %1004 = vmatprep.subr.bf16.mxu0 0
    %1005 = vmatpush1.bf16.msra.mxu0 0
    %1006 = vmatprep.mubr.bf16.mxu0 0
    %1007 = vmatmul.mubr.bf16.gmra.mrb[0].mxu0 %v969
    %v1008 = vpop.f32.mrb[0].mxu0
    %v1009 = vadd.f32 0.0, %v1008
    %v1010 = vpop.f32.mrb[0].mxu0
    %v1011 = vpop.f32.mrb[0].mxu0
    %v1012 = vadd.f32 0.0, %v1011
    %v1013 = vpop.f32.mrb[0].mxu0
    %1014 = vmatprep.mubr.bf16.mxu0 0
    %1015 = vmatmul.mubr.bf16.gmra.mrb[0].mxu0 %v972
    %v1016 = vpop.f32.mrb[0].mxu0
    %v1017 = vadd.f32 0.0, %v1016
    %v1018 = vpop.f32.mrb[0].mxu0
    %v1019 = vpop.f32.mrb[0].mxu0
    %v1020 = vadd.f32 0.0, %v1019
    %v1021 = vpop.f32.mrb[0].mxu0
    %1022 = vdwg.mxu0
    %v1023 = vadd.f32 %v955, %v1009
    %v1024 = vadd.f32 %v956, %v1012
    %v1025 = vadd.f32 %v957, %v1017
    %v1026 = vadd.f32 %v958, %v1020
    %s1027 = scalar_lea.vmem %s4, 64
    %v1028 = vld [vmem:[%s1027] sm:$0xf]
    %v1029 = vld [vmem:[%s1027 + $0x4] sm:$0xf]
    %v1032 = vunpack.c.l.b16 %v1028
    %v1033 = vunpack.c.l.b16 %v1029
    %v1034 = vpack.c.b16 %v1033, %v1032
    %v1037 = vsel %vm502, %v489, 0
    %v1040 = vsel %vm502, %v490, 0
    %1042 = vmatprep.subr.bf16.mxu0 0
    %1043 = vmatpush1.bf16.msra.mxu0 %v1034
    %1044 = vmatprep.subr.bf16.mxu0 0
    %1045 = vmatpush1.bf16.msra.mxu0 0
    %1046 = vmatprep.subr.bf16.mxu0 0
    %1047 = vmatpush1.bf16.msra.mxu0 0
    %1048 = vmatprep.subr.bf16.mxu0 0
    %1049 = vmatpush1.bf16.msra.mxu0 0
    %1050 = vmatprep.subr.bf16.mxu0 0
    %1051 = vmatpush1.bf16.msra.mxu0 0
    %1052 = vmatprep.subr.bf16.mxu0 0
    %1053 = vmatpush1.bf16.msra.mxu0 0
    %1054 = vmatprep.subr.bf16.mxu0 0
    %1055 = vmatpush1.bf16.msra.mxu0 0
    %1056 = vmatprep.subr.bf16.mxu0 0
    %1057 = vmatpush1.bf16.msra.mxu0 0
    %1058 = vmatprep.subr.bf16.mxu0 0
    %1059 = vmatpush1.bf16.msra.mxu0 0
    %1060 = vmatprep.subr.bf16.mxu0 0
    %1061 = vmatpush1.bf16.msra.mxu0 0
    %1062 = vmatprep.subr.bf16.mxu0 0
    %1063 = vmatpush1.bf16.msra.mxu0 0
    %1064 = vmatprep.subr.bf16.mxu0 0
    %1065 = vmatpush1.bf16.msra.mxu0 0
    %1066 = vmatprep.subr.bf16.mxu0 0
    %1067 = vmatpush1.bf16.msra.mxu0 0
    %1068 = vmatprep.subr.bf16.mxu0 0
    %1069 = vmatpush1.bf16.msra.mxu0 0
    %1070 = vmatprep.subr.bf16.mxu0 0
    %1071 = vmatpush1.bf16.msra.mxu0 0
    %1072 = vmatprep.subr.bf16.mxu0 0
    %1073 = vmatpush1.bf16.msra.mxu0 0
    %1074 = vmatprep.mubr.bf16.mxu0 0
    %1075 = vmatmul.mubr.bf16.gmra.mrb[0].mxu0 %v1037
    %v1076 = vpop.f32.mrb[0].mxu0
    %v1077 = vadd.f32 0.0, %v1076
    %v1078 = vpop.f32.mrb[0].mxu0
    %v1079 = vpop.f32.mrb[0].mxu0
    %v1080 = vadd.f32 0.0, %v1079
    %v1081 = vpop.f32.mrb[0].mxu0
    %1082 = vmatprep.mubr.bf16.mxu0 0
    %1083 = vmatmul.mubr.bf16.gmra.mrb[0].mxu0 %v1040
    %v1084 = vpop.f32.mrb[0].mxu0
    %v1085 = vadd.f32 0.0, %v1084
    %v1086 = vpop.f32.mrb[0].mxu0
    %v1087 = vpop.f32.mrb[0].mxu0
    %v1088 = vadd.f32 0.0, %v1087
    %v1089 = vpop.f32.mrb[0].mxu0
    %1090 = vdwg.mxu0
    %v1091 = vadd.f32 %v1023, %v1077
    %v1092 = vadd.f32 %v1024, %v1080
    %v1093 = vadd.f32 %v1025, %v1085
    %v1094 = vadd.f32 %v1026, %v1088
    %v1095 = vld [vmem:[%s5] sm:$0x1]
    %v1097 = vlaneseq
    %v1098 = vshrl.u32 %v1097, 7
    %v1099 = vsub.s32 0, %v1098
    %v1100 = vrot.slane %v1095, %v1099
    %v1102 = vadd.f32 %v1091, %v1100
    %v1103 = vadd.f32 %v1092, %v1100
    %v1104 = vadd.f32 %v1093, %v1100
    %v1105 = vadd.f32 %v1094, %v1100
    %v1106 = vmax.f32 %v1102, 0.0
    %v1107 = vmax.f32 %v1103, 0.0
    %v1108 = vmax.f32 %v1104, 0.0
    %v1109 = vmax.f32 %v1105, 0.0
    %v1110 = vpack.c.bf16 %v1107, %v1106
    %v1111 = vpack.c.bf16 %v1109, %v1108
    %vm1112 = vcmask 253952
    %1113 = vst.msk [vmem:[#allocation2] sm:$0x1] %vm1112, %v1110
    %v1116 = vunpack.c.l.s4 1966171168
    %v1117 = vunpack.c.0.s8 %v1116
    %v1118 = vlaneseq
    %v1119 = vshrl.u32 %v1118, 7
    %v1120 = vsub.s32 %v1117, %v1119
    %v1121 = vrot.slane %v1110, %v1120
    %v1122 = vcombine.high %v1121, %v1121
    %v1124 = vunpack.c.l.s4 1966171168
    %v1125 = vunpack.c.0.s8 %v1124
    %v1126 = vlaneseq
    %v1127 = vshrl.u32 %v1126, 7
    %v1128 = vsub.s32 %v1125, %v1127
    %v1129 = vrot.slane %v1121, %v1128
    %v1131 = vunpack.c.l.s4 1966171168
    %v1132 = vunpack.c.0.s8 %v1131
    %v1133 = vlaneseq
    %v1134 = vshrl.u32 %v1133, 7
    %v1135 = vsub.s32 %v1132, %v1134
    %v1136 = vrot.slane %v1122, %v1135
    %1137 = vrot.lane.b32.xlu0 %v1136, 32
    %v1138 = vpop.permute.xlu0 %1137
    %vm1140 = vcmask 516352
    %1141 = vst.msk [vmem:[#allocation2] sm:$0x1] %vm1140, %v1138
    %v1142 = vcombine.high %v1129, %v1129
    %1143 = vrot.lane.b32.xlu0 %v1142, 64
    %v1144 = vpop.permute.xlu0 %1143
    %vm1146 = vcmask 778752
    %1147 = vst.msk [vmem:[#allocation2] sm:$0x1] %vm1146, %v1144
    %v1148 = vcombine.high %v1136, %v1136
    %1149 = vrot.lane.b32.xlu0 %v1148, 96
    %v1150 = vpop.permute.xlu0 %1149
    %vm1152 = vcmask 1041152
    %1153 = vst.msk [vmem:[#allocation2] sm:$0x1] %vm1152, %v1150
    %v1154 = vcombine.high %v1110, %v1110
    %v1156 = vunpack.c.l.s4 1966171168
    %v1157 = vunpack.c.0.s8 %v1156
    %v1158 = vlaneseq
    %v1159 = vshrl.u32 %v1158, 7
    %v1160 = vsub.s32 %v1157, %v1159
    %v1161 = vrot.slane %v1154, %v1160
    %v1163 = vunpack.c.l.s4 1966171168
    %v1164 = vunpack.c.0.s8 %v1163
    %v1165 = vlaneseq
    %v1166 = vshrl.u32 %v1165, 7
    %v1167 = vsub.s32 %v1164, %v1166
    %v1168 = vrot.slane %v1161, %v1167
    %1170 = vst.msk [vmem:[#allocation2 + $0x1] sm:$0x1] %vm1112, %v1168
    %v1171 = vcombine.high %v1161, %v1161
    %v1173 = vunpack.c.l.s4 1966171168
    %v1174 = vunpack.c.0.s8 %v1173
    %v1175 = vlaneseq
    %v1176 = vshrl.u32 %v1175, 7
    %v1177 = vsub.s32 %v1174, %v1176
    %v1178 = vrot.slane %v1171, %v1177
    %1179 = vrot.lane.b32.xlu0 %v1178, 32
    %v1180 = vpop.permute.xlu0 %1179
    %1182 = vst.msk [vmem:[#allocation2 + $0x1] sm:$0x1] %vm1140, %v1180
    %v1183 = vcombine.high %v1168, %v1168
    %1184 = vrot.lane.b32.xlu0 %v1183, 64
    %v1185 = vpop.permute.xlu0 %1184
    %1187 = vst.msk [vmem:[#allocation2 + $0x1] sm:$0x1] %vm1146, %v1185
    %v1188 = vcombine.high %v1178, %v1178
    %1189 = vrot.lane.b32.xlu0 %v1188, 96
    %v1190 = vpop.permute.xlu0 %1189
    %1192 = vst.msk [vmem:[#allocation2 + $0x1] sm:$0x1] %vm1152, %v1190
    %1193 = vst.msk [vmem:[#allocation2 + $0x2] sm:$0x1] %vm1112, %v1111
    %v1194 = vld [vmem:[#allocation2] sm:$0x7]
    %v1195 = vld [vmem:[%s6] sm:$0xff]
    %v1196 = vld [vmem:[%s6 + $0x8] sm:$0xff]
    %v1197 = vld [vmem:[%s6 + $0x10] sm:$0xff]
    %v1198 = vld [vmem:[%s6 + $0x18] sm:$0xff]
    %v1199 = vld [vmem:[%s6 + $0x20] sm:$0xff]
    %v1200 = vld [vmem:[%s6 + $0x28] sm:$0xff]
    %v1201 = vld [vmem:[%s6 + $0x30] sm:$0xff]
    %v1202 = vld [vmem:[%s6 + $0x38] sm:$0xff]
    %v1203 = vld [vmem:[%s6 + $0x40] sm:$0xff]
    %v1204 = vld [vmem:[%s6 + $0x48] sm:$0xff]
    %v1205 = vld [vmem:[%s6 + $0x50] sm:$0xff]
    %v1206 = vld [vmem:[%s6 + $0x58] sm:$0xff]
    %v1207 = vld [vmem:[%s6 + $0x60] sm:$0xff]
    %v1208 = vld [vmem:[%s6 + $0x68] sm:$0xff]
    %v1209 = vld [vmem:[%s6 + $0x70] sm:$0xff]
    %v1210 = vld [vmem:[%s6 + $0x78] sm:$0xff]
    %v1211 = vld [vmem:[%s6 + $0x80] sm:$0xff]
    %v1212 = vld [vmem:[%s6 + $0x88] sm:$0xff]
    %v1213 = vld [vmem:[%s6 + $0x90] sm:$0xff]
    %v1214 = vld [vmem:[%s6 + $0x98] sm:$0xff]
    %v1215 = vld [vmem:[%s6 + $0xa0] sm:$0xff]
    %v1216 = vld [vmem:[%s6 + $0xa8] sm:$0xff]
    %v1217 = vld [vmem:[%s6 + $0xb0] sm:$0xff]
    %v1218 = vld [vmem:[%s6 + $0xb8] sm:$0xff]
    %v1219 = vld [vmem:[%s6 + $0xc0] sm:$0xff]
    %v1220 = vld [vmem:[%s6 + $0xc8] sm:$0xff]
    %v1221 = vld [vmem:[%s6 + $0xd0] sm:$0xff]
    %v1222 = vld [vmem:[%s6 + $0xd8] sm:$0xff]
    %v1223 = vld [vmem:[%s6 + $0xe0] sm:$0xff]
    %v1224 = vld [vmem:[%s6 + $0xe8] sm:$0xff]
    %v1225 = vld [vmem:[%s6 + $0xf0] sm:$0xff]
    %v1226 = vld [vmem:[%s6 + $0xf8] sm:$0xff]
    %v1227 = vld [vmem:[%s6 + $0x100] sm:$0xff]
    %v1228 = vld [vmem:[%s6 + $0x108] sm:$0xff]
    %v1229 = vld [vmem:[%s6 + $0x110] sm:$0xff]
    %v1230 = vld [vmem:[%s6 + $0x118] sm:$0xff]
    %v1231 = vld [vmem:[%s1] sm:$0x1]
    %v1232 = vld [vmem:[%s7] sm:$0x3]
    %v1235 = vunpack.c.l.s4 1966171168
    %v1236 = vunpack.c.0.s8 %v1235
    %v1237 = vlaneseq
    %v1238 = vshrl.u32 %v1237, 7
    %v1239 = vsub.s32 %v1236, %v1238
    %v1240 = vrot.slane %v1232, %v1239
    %v1241 = vcombine.high %v1240, %v1240
    %v1243 = vunpack.c.l.s4 1966171168
    %v1244 = vunpack.c.0.s8 %v1243
    %v1245 = vlaneseq
    %v1246 = vshrl.u32 %v1245, 7
    %v1247 = vsub.s32 %v1244, %v1246
    %v1248 = vrot.slane %v1240, %v1247
    %v1250 = vunpack.c.l.s4 1966171168
    %v1251 = vunpack.c.0.s8 %v1250
    %v1252 = vlaneseq
    %v1253 = vshrl.u32 %v1252, 7
    %v1254 = vsub.s32 %v1251, %v1253
    %v1255 = vrot.slane %v1241, %v1254
    %vm1256 = vcmask 15360
    %v1258 = vsel %vm1256, %v1231, 0
    %vm1260 = vcmask 1040384
    %v1262 = vsel %vm1260, %v1248, 0
    %v1265 = vsel %vm1260, %v1255, 0
    %1267 = vmatprep.subr.bf16.mxu0 %v1265
    %1268 = vmatpush1.bf16.msra.mxu0 %v1262
    %1269 = vmatprep.subr.bf16.mxu0 0
    %1270 = vmatpush1.bf16.msra.mxu0 0
    %1271 = vmatprep.subr.bf16.mxu0 0
    %1272 = vmatpush1.bf16.msra.mxu0 0
    %1273 = vmatprep.subr.bf16.mxu0 0
    %1274 = vmatpush1.bf16.msra.mxu0 0
    %1275 = vmatprep.subr.bf16.mxu0 0
    %1276 = vmatpush1.bf16.msra.mxu0 0
    %1277 = vmatprep.subr.bf16.mxu0 0
    %1278 = vmatpush1.bf16.msra.mxu0 0
    %1279 = vmatprep.subr.bf16.mxu0 0
    %1280 = vmatpush1.bf16.msra.mxu0 0
    %1281 = vmatprep.subr.bf16.mxu0 0
    %1282 = vmatpush1.bf16.msra.mxu0 0
    %1283 = vmatprep.subr.bf16.mxu0 0
    %1284 = vmatpush1.bf16.msra.mxu0 0
    %1285 = vmatprep.subr.bf16.mxu0 0
    %1286 = vmatpush1.bf16.msra.mxu0 0
    %1287 = vmatprep.subr.bf16.mxu0 0
    %1288 = vmatpush1.bf16.msra.mxu0 0
    %1289 = vmatprep.subr.bf16.mxu0 0
    %1290 = vmatpush1.bf16.msra.mxu0 0
    %1291 = vmatprep.subr.bf16.mxu0 0
    %1292 = vmatpush1.bf16.msra.mxu0 0
    %1293 = vmatprep.subr.bf16.mxu0 0
    %1294 = vmatpush1.bf16.msra.mxu0 0
    %1295 = vmatprep.subr.bf16.mxu0 0
    %1296 = vmatpush1.bf16.msra.mxu0 0
    %1297 = vmatprep.subr.bf16.mxu0 0
    %1298 = vmatpush1.bf16.msra.mxu0 0
    %1299 = vmatprep.mubr.bf16.mxu0 0
    %1300 = vmatmul.mubr.bf16.gmra.mrb[0].mxu0 %v1258
    %v1301 = vpop.f32.mrb[0].mxu0
    %v1302 = vadd.f32 0.0, %v1301
    %v1303 = vpop.f32.mrb[0].mxu0
    %v1304 = vadd.f32 0.0, %v1303
    %v1305 = vpop.f32.mrb[0].mxu0
    %v1306 = vpop.f32.mrb[0].mxu0
    %1307 = vdwg.mxu0
    %v1310 = vunpack.c.l.s4 1966171168
    %v1311 = vunpack.c.0.s8 %v1310
    %v1312 = vlaneseq
    %v1313 = vshrl.u32 %v1312, 7
    %v1314 = vsub.s32 %v1311, %v1313
    %v1315 = vrot.slane %v1194, %v1314
    %v1316 = vcombine.high %v1315, %v1315
    %v1318 = vunpack.c.l.s4 1966171168
    %v1319 = vunpack.c.0.s8 %v1318
    %v1320 = vlaneseq
    %v1321 = vshrl.u32 %v1320, 7
    %v1322 = vsub.s32 %v1319, %v1321
    %v1323 = vrot.slane %v1315, %v1322
    %v1325 = vunpack.c.l.s4 1966171168
    %v1326 = vunpack.c.0.s8 %v1325
    %v1327 = vlaneseq
    %v1328 = vshrl.u32 %v1327, 7
    %v1329 = vsub.s32 %v1326, %v1328
    %v1330 = vrot.slane %v1316, %v1329
    %v1331 = vcombine.high %v1323, %v1323
    %v1370 = vunpack.c.l.b16 %v1195
    %v1371 = vunpack.c.h.b16 %v1195
    %v1372 = vunpack.c.l.b16 %v1196
    %v1373 = vunpack.c.h.b16 %v1196
    %v1374 = vunpack.c.l.b16 %v1197
    %v1375 = vunpack.c.h.b16 %v1197
    %v1376 = vunpack.c.l.b16 %v1198
    %v1377 = vunpack.c.h.b16 %v1198
    %v1378 = vunpack.c.l.b16 %v1199
    %v1379 = vunpack.c.h.b16 %v1199
    %v1380 = vunpack.c.l.b16 %v1200
    %v1381 = vunpack.c.h.b16 %v1200
    %v1382 = vunpack.c.l.b16 %v1201
    %v1383 = vunpack.c.h.b16 %v1201
    %v1384 = vunpack.c.l.b16 %v1202
    %v1385 = vunpack.c.h.b16 %v1202
    %v1386 = vunpack.c.l.b16 %v1203
    %v1387 = vunpack.c.h.b16 %v1203
    %v1388 = vunpack.c.l.b16 %v1204
    %v1389 = vunpack.c.h.b16 %v1204
    %v1390 = vunpack.c.l.b16 %v1205
    %v1391 = vunpack.c.h.b16 %v1205
    %v1392 = vunpack.c.l.b16 %v1206
    %v1393 = vunpack.c.h.b16 %v1206
    %v1394 = vunpack.c.l.b16 %v1207
    %v1395 = vunpack.c.h.b16 %v1207
    %v1396 = vunpack.c.l.b16 %v1208
    %v1397 = vunpack.c.h.b16 %v1208
    %v1398 = vunpack.c.l.b16 %v1209
    %v1399 = vunpack.c.h.b16 %v1209
    %v1400 = vunpack.c.l.b16 %v1210
    %v1401 = vunpack.c.h.b16 %v1210
    %v1402 = vunpack.c.l.b16 %v1211
    %v1403 = vunpack.c.h.b16 %v1211
    %v1404 = vunpack.c.l.b16 %v1212
    %v1405 = vunpack.c.h.b16 %v1212
    %v1406 = vunpack.c.l.b16 %v1213
    %v1407 = vunpack.c.h.b16 %v1213
    %v1408 = vunpack.c.l.b16 %v1214
    %v1409 = vunpack.c.h.b16 %v1214
    %v1410 = vunpack.c.l.b16 %v1215
    %v1411 = vunpack.c.h.b16 %v1215
    %v1412 = vunpack.c.l.b16 %v1216
    %v1413 = vunpack.c.h.b16 %v1216
    %v1414 = vunpack.c.l.b16 %v1217
    %v1415 = vunpack.c.h.b16 %v1217
    %v1416 = vunpack.c.l.b16 %v1218
    %v1417 = vunpack.c.h.b16 %v1218
    %v1418 = vunpack.c.l.b16 %v1219
    %v1419 = vunpack.c.h.b16 %v1219
    %v1420 = vunpack.c.l.b16 %v1220
    %v1421 = vunpack.c.h.b16 %v1220
    %v1422 = vunpack.c.l.b16 %v1221
    %v1423 = vunpack.c.h.b16 %v1221
    %v1424 = vunpack.c.l.b16 %v1222
    %v1425 = vunpack.c.h.b16 %v1222
    %v1426 = vunpack.c.l.b16 %v1223
    %v1427 = vunpack.c.h.b16 %v1223
    %v1428 = vunpack.c.l.b16 %v1224
    %v1429 = vunpack.c.h.b16 %v1224
    %v1430 = vunpack.c.l.b16 %v1225
    %v1431 = vunpack.c.h.b16 %v1225
    %v1432 = vunpack.c.l.b16 %v1226
    %v1433 = vunpack.c.h.b16 %v1226
    %v1434 = vunpack.c.l.b16 %v1227
    %v1435 = vunpack.c.h.b16 %v1227
    %v1436 = vunpack.c.l.b16 %v1228
    %v1437 = vunpack.c.h.b16 %v1228
    %v1438 = vunpack.c.l.b16 %v1229
    %v1439 = vunpack.c.h.b16 %v1229
    %v1440 = vunpack.c.l.b16 %v1230
    %v1441 = vunpack.c.h.b16 %v1230
    %v1442 = vpack.c.b16 %v1372, %v1370
    %v1443 = vpack.c.b16 %v1373, %v1371
    %v1444 = vpack.c.b16 %v1376, %v1374
    %v1445 = vpack.c.b16 %v1377, %v1375
    %v1446 = vpack.c.b16 %v1380, %v1378
    %v1447 = vpack.c.b16 %v1381, %v1379
    %v1448 = vpack.c.b16 %v1384, %v1382
    %v1449 = vpack.c.b16 %v1385, %v1383
    %v1450 = vpack.c.b16 %v1388, %v1386
    %v1451 = vpack.c.b16 %v1389, %v1387
    %v1452 = vpack.c.b16 %v1392, %v1390
    %v1453 = vpack.c.b16 %v1393, %v1391
    %v1454 = vpack.c.b16 %v1396, %v1394
    %v1455 = vpack.c.b16 %v1397, %v1395
    %v1456 = vpack.c.b16 %v1400, %v1398
    %v1457 = vpack.c.b16 %v1401, %v1399
    %v1458 = vpack.c.b16 %v1404, %v1402
    %v1459 = vpack.c.b16 %v1405, %v1403
    %v1460 = vpack.c.b16 %v1408, %v1406
    %v1461 = vpack.c.b16 %v1409, %v1407
    %v1462 = vpack.c.b16 %v1412, %v1410
    %v1463 = vpack.c.b16 %v1413, %v1411
    %v1464 = vpack.c.b16 %v1416, %v1414
    %v1465 = vpack.c.b16 %v1417, %v1415
    %v1466 = vpack.c.b16 %v1420, %v1418
    %v1467 = vpack.c.b16 %v1421, %v1419
    %v1468 = vpack.c.b16 %v1424, %v1422
    %v1469 = vpack.c.b16 %v1425, %v1423
    %v1470 = vpack.c.b16 %v1428, %v1426
    %v1471 = vpack.c.b16 %v1429, %v1427
    %v1472 = vpack.c.b16 %v1432, %v1430
    %v1473 = vpack.c.b16 %v1433, %v1431
    %v1474 = vpack.c.b16 %v1436, %v1434
    %v1475 = vpack.c.b16 %v1437, %v1435
    %v1476 = vpack.c.b16 %v1440, %v1438
    %v1477 = vpack.c.b16 %v1441, %v1439
    %vm1514 = vcmask 261120
    %v1516 = vsel %vm1514, %v1331, 0
    %1518 = vmatprep.subr.bf16.mxu0 %v1443
    %1519 = vmatpush1.bf16.msra.mxu0 %v1442
    %1520 = vmatprep.subr.bf16.mxu0 %v1445
    %1521 = vmatpush1.bf16.msra.mxu0 %v1444
    %1522 = vmatprep.subr.bf16.mxu0 %v1447
    %1523 = vmatpush1.bf16.msra.mxu0 %v1446
    %1524 = vmatprep.subr.bf16.mxu0 %v1449
    %1525 = vmatpush1.bf16.msra.mxu0 %v1448
    %1526 = vmatprep.subr.bf16.mxu0 %v1451
    %1527 = vmatpush1.bf16.msra.mxu0 %v1450
    %1528 = vmatprep.subr.bf16.mxu0 %v1453
    %1529 = vmatpush1.bf16.msra.mxu0 %v1452
    %1530 = vmatprep.subr.bf16.mxu0 %v1455
    %1531 = vmatpush1.bf16.msra.mxu0 %v1454
    %1532 = vmatprep.subr.bf16.mxu0 %v1457
    %1533 = vmatpush1.bf16.msra.mxu0 %v1456
    %1534 = vmatprep.subr.bf16.mxu0 %v1459
    %1535 = vmatpush1.bf16.msra.mxu0 %v1458
    %1536 = vmatprep.subr.bf16.mxu0 %v1461
    %1537 = vmatpush1.bf16.msra.mxu0 %v1460
    %1538 = vmatprep.subr.bf16.mxu0 %v1463
    %1539 = vmatpush1.bf16.msra.mxu0 %v1462
    %1540 = vmatprep.subr.bf16.mxu0 %v1465
    %1541 = vmatpush1.bf16.msra.mxu0 %v1464
    %1542 = vmatprep.subr.bf16.mxu0 %v1467
    %1543 = vmatpush1.bf16.msra.mxu0 %v1466
    %1544 = vmatprep.subr.bf16.mxu0 %v1469
    %1545 = vmatpush1.bf16.msra.mxu0 %v1468
    %1546 = vmatprep.subr.bf16.mxu0 %v1471
    %1547 = vmatpush1.bf16.msra.mxu0 %v1470
    %1548 = vmatprep.subr.bf16.mxu0 %v1473
    %1549 = vmatpush1.bf16.msra.mxu0 %v1472
    %1550 = vmatprep.mubr.bf16.mxu0 %v1330
    %1551 = vmatmul.mubr.bf16.gmra.mrb[0].mxu0 %v1323
    %v1552 = vpop.f32.mrb[0].mxu0
    %v1553 = vadd.f32 %v1302, %v1552
    %v1554 = vpop.f32.mrb[0].mxu0
    %v1555 = vadd.f32 %v1304, %v1554
    %v1556 = vpop.f32.mrb[0].mxu0
    %v1557 = vpop.f32.mrb[0].mxu0
    %1558 = vdwg.mxu0
    %1559 = vmatprep.subr.bf16.mxu0 %v1475
    %1560 = vmatpush1.bf16.msra.mxu0 %v1474
    %1561 = vmatprep.subr.bf16.mxu0 %v1477
    %1562 = vmatpush1.bf16.msra.mxu0 %v1476
    %1563 = vmatprep.subr.bf16.mxu0 0
    %1564 = vmatpush1.bf16.msra.mxu0 0
    %1565 = vmatprep.subr.bf16.mxu0 0
    %1566 = vmatpush1.bf16.msra.mxu0 0
    %1567 = vmatprep.subr.bf16.mxu0 0
    %1568 = vmatpush1.bf16.msra.mxu0 0
    %1569 = vmatprep.subr.bf16.mxu0 0
    %1570 = vmatpush1.bf16.msra.mxu0 0
    %1571 = vmatprep.subr.bf16.mxu0 0
    %1572 = vmatpush1.bf16.msra.mxu0 0
    %1573 = vmatprep.subr.bf16.mxu0 0
    %1574 = vmatpush1.bf16.msra.mxu0 0
    %1575 = vmatprep.subr.bf16.mxu0 0
    %1576 = vmatpush1.bf16.msra.mxu0 0
    %1577 = vmatprep.subr.bf16.mxu0 0
    %1578 = vmatpush1.bf16.msra.mxu0 0
    %1579 = vmatprep.subr.bf16.mxu0 0
    %1580 = vmatpush1.bf16.msra.mxu0 0
    %1581 = vmatprep.subr.bf16.mxu0 0
    %1582 = vmatpush1.bf16.msra.mxu0 0
    %1583 = vmatprep.subr.bf16.mxu0 0
    %1584 = vmatpush1.bf16.msra.mxu0 0
    %1585 = vmatprep.subr.bf16.mxu0 0
    %1586 = vmatpush1.bf16.msra.mxu0 0
    %1587 = vmatprep.subr.bf16.mxu0 0
    %1588 = vmatpush1.bf16.msra.mxu0 0
    %1589 = vmatprep.subr.bf16.mxu0 0
    %1590 = vmatpush1.bf16.msra.mxu0 0
    %1591 = vmatprep.mubr.bf16.mxu0 0
    %1592 = vmatmul.mubr.bf16.gmra.mrb[0].mxu0 %v1516
    %v1593 = vpop.f32.mrb[0].mxu0
    %v1594 = vadd.f32 %v1553, %v1593
    %v1595 = vpop.f32.mrb[0].mxu0
    %v1596 = vadd.f32 %v1555, %v1595
    %v1597 = vpop.f32.mrb[0].mxu0
    %v1598 = vpop.f32.mrb[0].mxu0
    %1599 = vdwg.mxu0
    %v1600 = vld [vmem:[%s8] sm:$0x3]
    %v1602 = vlaneseq
    %v1603 = vshrl.u32 %v1602, 7
    %v1604 = vsub.s32 0, %v1603
    %v1605 = vrot.slane %v1600, %v1604
    %v1606 = vlaneseq
    %v1607 = vshrl.u32 %v1606, 7
    %v1608 = vsub.s32 1, %v1607
    %v1609 = vrot.slane %v1600, %v1608
    %v1612 = vadd.f32 %v1594, %v1605
    %v1613 = vadd.f32 %v1596, %v1609
    %v1614 = vmax.f32 %v1612, 0.0
    %v1615 = vmax.f32 %v1613, 0.0
    %v1616 = vpack.c.bf16 %v1614, %v1614
    %v1617 = vpack.c.bf16 %v1615, %v1615
    %v1618 = vld [vmem:[%s9] sm:$0xf]
    %v1619 = vld [vmem:[%s9 + $0x4] sm:$0xf]
    %v1620 = vld [vmem:[%s9 + $0x8] sm:$0xf]
    %v1621 = vld [vmem:[%s9 + $0xc] sm:$0xf]
    %v1622 = vld [vmem:[%s9 + $0x10] sm:$0xf]
    %v1623 = vld [vmem:[%s9 + $0x14] sm:$0xf]
    %v1624 = vld [vmem:[%s9 + $0x18] sm:$0xf]
    %v1625 = vld [vmem:[%s9 + $0x1c] sm:$0xf]
    %v1626 = vld [vmem:[%s9 + $0x20] sm:$0xf]
    %v1627 = vld [vmem:[%s9 + $0x24] sm:$0xf]
    %v1628 = vld [vmem:[%s9 + $0x28] sm:$0xf]
    %v1629 = vld [vmem:[%s9 + $0x2c] sm:$0xf]
    %v1630 = vld [vmem:[%s9 + $0x30] sm:$0xf]
    %v1631 = vld [vmem:[%s9 + $0x34] sm:$0xf]
    %v1632 = vld [vmem:[%s9 + $0x38] sm:$0xf]
    %v1633 = vld [vmem:[%s9 + $0x3c] sm:$0xf]
    %v1634 = vld [vmem:[%s9 + $0x40] sm:$0xf]
    %v1635 = vld [vmem:[%s9 + $0x44] sm:$0xf]
    %v1636 = vld [vmem:[%s9 + $0x48] sm:$0xf]
    %v1637 = vld [vmem:[%s9 + $0x4c] sm:$0xf]
    %v1638 = vld [vmem:[%s9 + $0x50] sm:$0xf]
    %v1639 = vld [vmem:[%s9 + $0x54] sm:$0xf]
    %v1640 = vld [vmem:[%s9 + $0x58] sm:$0xf]
    %v1641 = vld [vmem:[%s9 + $0x5c] sm:$0xf]
    %v1642 = vld [vmem:[%s9 + $0x60] sm:$0xf]
    %v1643 = vld [vmem:[%s9 + $0x64] sm:$0xf]
    %v1644 = vld [vmem:[%s9 + $0x68] sm:$0xf]
    %v1645 = vld [vmem:[%s9 + $0x6c] sm:$0xf]
    %v1646 = vld [vmem:[%s9 + $0x70] sm:$0xf]
    %v1647 = vld [vmem:[%s9 + $0x74] sm:$0xf]
    %v1648 = vld [vmem:[%s9 + $0x78] sm:$0xf]
    %v1649 = vld [vmem:[%s9 + $0x7c] sm:$0xf]
    %v1650 = vld [vmem:[%s10] sm:$0x1]
    %v1652 = vlaneseq
    %v1653 = vshrl.u32 %v1652, 7
    %v1654 = vsub.s32 0, %v1653
    %v1655 = vrot.slane %v1650, %v1654
    %v1689 = vunpack.c.l.b16 %v1618
    %v1690 = vunpack.c.l.b16 %v1619
    %v1691 = vunpack.c.l.b16 %v1620
    %v1692 = vunpack.c.l.b16 %v1621
    %v1693 = vunpack.c.l.b16 %v1622
    %v1694 = vunpack.c.l.b16 %v1623
    %v1695 = vunpack.c.l.b16 %v1624
    %v1696 = vunpack.c.l.b16 %v1625
    %v1697 = vunpack.c.l.b16 %v1626
    %v1698 = vunpack.c.l.b16 %v1627
    %v1699 = vunpack.c.l.b16 %v1628
    %v1700 = vunpack.c.l.b16 %v1629
    %v1701 = vunpack.c.l.b16 %v1630
    %v1702 = vunpack.c.l.b16 %v1631
    %v1703 = vunpack.c.l.b16 %v1632
    %v1704 = vunpack.c.l.b16 %v1633
    %v1705 = vunpack.c.l.b16 %v1634
    %v1706 = vunpack.c.l.b16 %v1635
    %v1707 = vunpack.c.l.b16 %v1636
    %v1708 = vunpack.c.l.b16 %v1637
    %v1709 = vunpack.c.l.b16 %v1638
    %v1710 = vunpack.c.l.b16 %v1639
    %v1711 = vunpack.c.l.b16 %v1640
    %v1712 = vunpack.c.l.b16 %v1641
    %v1713 = vunpack.c.l.b16 %v1642
    %v1714 = vunpack.c.l.b16 %v1643
    %v1715 = vunpack.c.l.b16 %v1644
    %v1716 = vunpack.c.l.b16 %v1645
    %v1717 = vunpack.c.l.b16 %v1646
    %v1718 = vunpack.c.l.b16 %v1647
    %v1719 = vunpack.c.l.b16 %v1648
    %v1720 = vunpack.c.l.b16 %v1649
    %v1721 = vpack.c.b16 %v1690, %v1689
    %v1722 = vpack.c.b16 %v1692, %v1691
    %v1723 = vpack.c.b16 %v1694, %v1693
    %v1724 = vpack.c.b16 %v1696, %v1695
    %v1725 = vpack.c.b16 %v1698, %v1697
    %v1726 = vpack.c.b16 %v1700, %v1699
    %v1727 = vpack.c.b16 %v1702, %v1701
    %v1728 = vpack.c.b16 %v1704, %v1703
    %v1729 = vpack.c.b16 %v1706, %v1705
    %v1730 = vpack.c.b16 %v1708, %v1707
    %v1731 = vpack.c.b16 %v1710, %v1709
    %v1732 = vpack.c.b16 %v1712, %v1711
    %v1733 = vpack.c.b16 %v1714, %v1713
    %v1734 = vpack.c.b16 %v1716, %v1715
    %v1735 = vpack.c.b16 %v1718, %v1717
    %v1736 = vpack.c.b16 %v1720, %v1719
    %1753 = vmatprep.subr.bf16.mxu0 0
    %1754 = vmatpush1.bf16.msra.mxu0 %v1721
    %1755 = vmatprep.subr.bf16.mxu0 0
    %1756 = vmatpush1.bf16.msra.mxu0 %v1722
    %1757 = vmatprep.subr.bf16.mxu0 0
    %1758 = vmatpush1.bf16.msra.mxu0 %v1723
    %1759 = vmatprep.subr.bf16.mxu0 0
    %1760 = vmatpush1.bf16.msra.mxu0 %v1724
    %1761 = vmatprep.subr.bf16.mxu0 0
    %1762 = vmatpush1.bf16.msra.mxu0 %v1725
    %1763 = vmatprep.subr.bf16.mxu0 0
    %1764 = vmatpush1.bf16.msra.mxu0 %v1726
    %1765 = vmatprep.subr.bf16.mxu0 0
    %1766 = vmatpush1.bf16.msra.mxu0 %v1727
    %1767 = vmatprep.subr.bf16.mxu0 0
    %1768 = vmatpush1.bf16.msra.mxu0 %v1728
    %1769 = vmatprep.subr.bf16.mxu0 0
    %1770 = vmatpush1.bf16.msra.mxu0 %v1729
    %1771 = vmatprep.subr.bf16.mxu0 0
    %1772 = vmatpush1.bf16.msra.mxu0 %v1730
    %1773 = vmatprep.subr.bf16.mxu0 0
    %1774 = vmatpush1.bf16.msra.mxu0 %v1731
    %1775 = vmatprep.subr.bf16.mxu0 0
    %1776 = vmatpush1.bf16.msra.mxu0 %v1732
    %1777 = vmatprep.subr.bf16.mxu0 0
    %1778 = vmatpush1.bf16.msra.mxu0 %v1733
    %1779 = vmatprep.subr.bf16.mxu0 0
    %1780 = vmatpush1.bf16.msra.mxu0 %v1734
    %1781 = vmatprep.subr.bf16.mxu0 0
    %1782 = vmatpush1.bf16.msra.mxu0 %v1735
    %1783 = vmatprep.subr.bf16.mxu0 0
    %1784 = vmatpush1.bf16.msra.mxu0 %v1736
    %1785 = vmatprep.mubr.bf16.mxu0 %v1617
    %1786 = vmatmul.mubr.bf16.gmra.mrb[0].mxu0 %v1616
    %v1787 = vpop.f32.mrb[0].mxu0
    %v1788 = vadd.f32 %v1655, %v1787
    %v1789 = vpop.f32.mrb[0].mxu0
    %v1790 = vpop.f32.mrb[0].mxu0
    %v1791 = vpop.f32.mrb[0].mxu0
    %1792 = vdwg.mxu0
    %vm1793 = vcmask 9216
    %1794 = vst.msk [vmem:[#allocation3] sm:$0x3] %vm1793, %v1788
    // Predicated region
    $region46: #{multi_agent_cnn_critic.1} parent=1 // pred_check
      _
    $region47: #{multi_agent_cnn_critic.1} parent=1 // pred_check_branch
      %1796 = sbr.rel (0) target = $region49
    $region48: #{multi_agent_cnn_critic.1} parent=1 // pred_region
      %s1798 = ssub.s32 32, 32
      %1799 = vsyncadd [#allocation4], %s1798
      %s1801 = sshll.u32 [#allocation3], 4
      %s1802 = int_to_ptr.vmem [resolvable:$true] %s1801
      %1804 = dma.vmem_to_hbm [thread:$0]  %s1802, 32, %s11, [#allocation4]
    $region49: #{multi_agent_cnn_critic.1} parent=1 // pred_fallthru
      _
    // Predicated region
    $region50: #{multi_agent_cnn_critic.1} parent=1 // pred_check
      _
    $region51: #{multi_agent_cnn_critic.1} parent=1 // pred_check_branch
      %1806 = sbr.rel (0) target = $region53
    $region52: #{multi_agent_cnn_critic.1} parent=1 // pred_region
      %1807 = dma.done [#allocation4], 32
    $region53: #{multi_agent_cnn_critic.1} parent=1 // pred_fallthru
      _
    %1808 = vsyncpa [#allocation4], 1

</llo_original>
